<compile_context>
chip_gen: v6e
topology: v6e:2x2x1
jax: 0.10.0
libtpu: 0.0.40
codegen_flags: <defaults>
</compile_context>

<pallas_src>
import functools

import jax
import jax.numpy as jnp
from jax.experimental import pallas as pl
from jax.experimental.pallas import tpu as pltpu

INPUT_SIZE = 784          # 28 * 28
HIDDEN = 512
OUTPUT_SIZE = 10
OUT_PAD = 128             # lane-padded logits width


def _round_up(x, m):
    return (x + m - 1) // m * m


def _vmem_capacity_bytes():
    """Best-effort per-core VMEM capacity (only used for tile / limit sizing)."""
    try:
        return int(pltpu.get_tpu_info().vmem_capacity_bytes)
    except Exception:
        pass
    try:
        kind = jax.devices()[0].device_kind.lower()
        if "v7" in kind:
            return 64 * 1024 * 1024        # v7x: 64 MiB per TensorCore
        return 128 * 1024 * 1024           # v5e / v6e: 128 MiB
    except Exception:
        return 64 * 1024 * 1024            # conservative fallback


_VMEM_CAP_BYTES = _vmem_capacity_bytes()
_BIG_VMEM = _VMEM_CAP_BYTES >= 96 * 1024 * 1024     # v5e / v6e (128 MiB, single TC)
_VMEM_BUDGET = (_VMEM_CAP_BYTES * 5) // 8           # ~40 MiB on v7x, ~80 MiB on v5e/v6e


def _mlp_kernel(x_ref, w1_ref, b1_ref, w2_ref, b2_ref, w3_ref, b3_ref, o_ref):
    """Fused 3-layer MLP forward for one batch tile (all operands resident in VMEM).

    x arrives as f32 and is cast to the weights' dtype in-kernel (VPU); matmuls run on
    the MXU with f32 accumulation; bias-add + ReLU run in f32 on the VPU.
    """
    x = x_ref[...].astype(w1_ref.dtype)                                      # (TB, 784)
    h1 = jnp.dot(x, w1_ref[...], preferred_element_type=jnp.float32)         # (TB, 512) f32
    h1 = jnp.maximum(h1 + b1_ref[...], 0.0)                                   # ReLU (f32)
    h2 = jnp.dot(h1.astype(w2_ref.dtype), w2_ref[...],
                 preferred_element_type=jnp.float32)                          # (TB, 512) f32
    h2 = jnp.maximum(h2 + b2_ref[...], 0.0)                                   # ReLU (f32)
    logits = jnp.dot(h2.astype(w3_ref.dtype), w3_ref[...],
                     preferred_element_type=jnp.float32)                      # (TB, 128) f32
    o_ref[...] = logits + b3_ref[...]


def _pick_tile(B, batch_tile, w_itemsize):
    """Pick the batch tile TB and the padded batch Bp."""
    if batch_tile is not None:
        tile_cap = max(int(batch_tile), 8)
    elif _BIG_VMEM:
        tile_cap = 4096 if w_itemsize <= 2 else 2048    # v5e / v6e: 128 MiB VMEM
    else:
        tile_cap = 2048 if w_itemsize <= 2 else 1024    # v7x: 64 MiB VMEM
    # Keep the grid at >= 2 steps whenever the batch allows it, so the "parallel"
    # batch axis can shard across both v7x TensorCores (harmless on 1-TC chips).
    bp8 = _round_up(max(B, 1), 8)
    half = _round_up((bp8 + 1) // 2, 8)
    tb = max(8, min(tile_cap, half))
    bp = _round_up(max(B, 1), tb)
    return tb, bp


def _vmem_limit(tb, x_itemsize, w_itemsize):
    """Estimate the per-step VMEM footprint and turn it into a vmem limit."""
    x_b = 2 * tb * INPUT_SIZE * x_itemsize                       # double-buffered x tile
    o_b = 2 * tb * OUT_PAD * 4                                   # double-buffered f32 out tile
    w_b = (INPUT_SIZE * HIDDEN + HIDDEN * HIDDEN + HIDDEN * OUT_PAD) * w_itemsize
    w_b += (2 * HIDDEN + OUT_PAD) * 4                            # f32 biases (single-buffered)
    tmp_b = 2 * tb * HIDDEN * (4 + w_itemsize)                   # h1/h2 f32 + casted copies
    est = x_b + o_b + w_b + tmp_b + (8 << 20)                    # + compiler scratch headroom
    return int(min(est, _VMEM_BUDGET))


@functools.partial(jax.jit, static_argnames=("batch_tile",))
def nn_forward(x, prepared_params, *, batch_tile=None):
    """Forward pass matching NN.forward(x). x: (B, 1, 28, 28) or (B, 784)."""
    w1, b1, w2, b2, w3p, b3p = prepared_params
    w_itemsize = jnp.dtype(w1.dtype).itemsize

    # nn.Flatten(): collapse all non-batch dims, row-major (matches torch).
    B = x.shape[0]
    x2d = x.reshape(B, -1).astype(jnp.float32)          # (B, 784) — no K padding, no dtype cast
    assert x2d.shape[1] == INPUT_SIZE

    TB, Bp = _pick_tile(B, batch_tile, w_itemsize)
    if Bp != B:                                          # only pad the batch remainder
        x2d = jnp.pad(x2d, ((0, Bp - B), (0, 0)))

    const = lambda i: (0, 0)
    weight_mode = pl.Buffered(1)     # grid-invariant blocks: single-buffer, save VMEM

    flops = 2 * Bp * (INPUT_SIZE * HIDDEN + HIDDEN * HIDDEN + HIDDEN * OUT_PAD)
    bytes_accessed = (Bp * INPUT_SIZE * 4
                      + (INPUT_SIZE * HIDDEN + HIDDEN * HIDDEN + HIDDEN * OUT_PAD) * w_itemsize
                      + Bp * OUT_PAD * 4)

    out = pl.pallas_call(
        _mlp_kernel,
        out_shape=jax.ShapeDtypeStruct((Bp, OUT_PAD), jnp.float32),
        grid_spec=pltpu.PrefetchScalarGridSpec(
            num_scalar_prefetch=0,
            grid=(Bp // TB,),
            in_specs=[
                pl.BlockSpec((TB, INPUT_SIZE), lambda i: (i, 0)),                          # x tile (784 = full dim)
                pl.BlockSpec((INPUT_SIZE, HIDDEN), const, pipeline_mode=weight_mode),       # w1
                pl.BlockSpec((1, HIDDEN), const, pipeline_mode=weight_mode),                # b1
                pl.BlockSpec((HIDDEN, HIDDEN), const, pipeline_mode=weight_mode),           # w2
                pl.BlockSpec((1, HIDDEN), const, pipeline_mode=weight_mode),                # b2
                pl.BlockSpec((HIDDEN, OUT_PAD), const, pipeline_mode=weight_mode),          # w3 (lane-padded)
                pl.BlockSpec((1, OUT_PAD), const, pipeline_mode=weight_mode),               # b3 (lane-padded)
            ],
            out_specs=pl.BlockSpec((TB, OUT_PAD), lambda i: (i, 0)),
        ),
        compiler_params=pltpu.CompilerParams(
            dimension_semantics=("parallel",),       # batch axis shards across TCs (v7x megacore)
            vmem_limit_bytes=_vmem_limit(TB, 4, w_itemsize),
        ),
        cost_estimate=pl.CostEstimate(
            flops=flops, transcendentals=0, bytes_accessed=bytes_accessed),
    )(x2d, w1, b1, w2, b2, w3p, b3p)

    return out[:B, :OUTPUT_SIZE]                      # (B, 10) f32 logits


def prepare_params(params, compute_dtype=jnp.bfloat16):
    """One-time padding / casting of the raw Linear params for the kernel.

    - casts matmul weights to compute_dtype (bf16 by default: full-rate MXU on
      v6e/v7x, half the weight DMA bytes); w1 stays (784, 512) — Mosaic pads K
      internally, the activations are never padded/cast on the host side
    - pads w3/b3's output dim 10 -> 128 (zeros) for lane-dense stores
    - keeps biases in f32 (bias-add + ReLU run in f32 on the VPU)
    Call once; pass the result to nn_forward (keeps padding out of the hot path).
    Note: the bf16 path also casts activations in-kernel; numerics differ slightly
    from the f32 PyTorch module (covered by the loose tolerance below).
    """
    w1, b1, w2, b2, w3, b3 = params
    w1c = w1.astype(compute_dtype)
    w2c = w2.astype(compute_dtype)
    w3p = jnp.pad(w3, ((0, 0), (0, OUT_PAD - OUTPUT_SIZE))).astype(compute_dtype)
    b1f = b1.reshape(1, HIDDEN).astype(jnp.float32)
    b2f = b2.reshape(1, HIDDEN).astype(jnp.float32)
    b3p = jnp.pad(b3.reshape(1, OUTPUT_SIZE),
                  ((0, 0), (0, OUT_PAD - OUTPUT_SIZE))).astype(jnp.float32)
    return (w1c, b1f, w2c, b2f, w3p, b3p)


def init_params(key):
    """Deterministic init mimicking torch.nn.Linear default (U[-1/sqrt(fan_in), 1/sqrt(fan_in)])."""
    ks = jax.random.split(key, 6)

    def linear(kw, kb, fan_in, fan_out):
        bound = 1.0 / jnp.sqrt(jnp.float32(fan_in))
        w = jax.random.uniform(kw, (fan_in, fan_out), jnp.float32, -bound, bound)
        b = jax.random.uniform(kb, (1, fan_out), jnp.float32, -bound, bound)
        return w, b

    w1, b1 = linear(ks[0], ks[1], INPUT_SIZE, HIDDEN)
    w2, b2 = linear(ks[2], ks[3], HIDDEN, HIDDEN)
    w3, b3 = linear(ks[4], ks[5], HIDDEN, OUTPUT_SIZE)
    return (w1, b1, w2, b2, w3, b3)


def reference_forward(x, params):
    """Pure-JAX f32 reference for correctness check."""
    w1, b1, w2, b2, w3, b3 = params
    h = x.reshape(x.shape[0], -1).astype(jnp.float32)
    h = jnp.maximum(h @ w1 + b1, 0.0)
    h = jnp.maximum(h @ w2 + b2, 0.0)
    return h @ w3 + b3


# TODO(synk): training loop (CrossEntropyLoss, SGD, DataLoader) from NN.train/test is out of
# scope for this forward-pass kernel.

if __name__ == "__main__":
    key = jax.random.PRNGKey(0)
    k_param, k_x, k_x2 = jax.random.split(key, 3)

    params = init_params(k_param)
    params_f32 = prepare_params(params, jnp.float32)
    params_bf16 = prepare_params(params)

    # Small MNIST-like batch: (B, 1, 28, 28) NCHW.
    B = 8
    x = jax.random.normal(k_x, (B, 1, 28, 28), jnp.float32)
    ref = reference_forward(x, params)

    # f32 compute path: exact semantics, tight tolerance.
    logits_f32 = jax.block_until_ready(nn_forward(x, params_f32))
    assert logits_f32.shape == (B, OUTPUT_SIZE)
    assert jnp.allclose(logits_f32, ref, atol=1e-4, rtol=1e-4), "f32 mismatch vs reference"

    # Default bf16-matmul path (fast MXU path on v6e/v7x): f32 accumulation, loose tolerance.
    logits_bf16 = jax.block_until_ready(nn_forward(x, params_bf16))
    assert logits_bf16.shape == (B, OUTPUT_SIZE)
    scale = jnp.maximum(jnp.max(jnp.abs(ref)), 1.0)
    assert jnp.max(jnp.abs(logits_bf16 - ref)) / scale < 5e-2, "bf16 mismatch vs reference"

    # Larger batch: exercises the multi-step grid (>= 2 tiles) and remainder padding.
    B2 = 520
    x2 = jax.random.normal(k_x2, (B2, 1, 28, 28), jnp.float32)
    ref2 = reference_forward(x2, params)
    logits2 = jax.block_until_ready(nn_forward(x2, params_bf16))
    assert logits2.shape == (B2, OUTPUT_SIZE)
    scale2 = jnp.maximum(jnp.max(jnp.abs(ref2)), 1.0)
    assert jnp.max(jnp.abs(logits2 - ref2)) / scale2 < 5e-2, "bf16 mismatch vs reference (B=520)"

    print("KERNEL_OK")
</pallas_src>

<mosaic_0001>
module attributes {stable_mosaic.version = 11 : i64} {
  func.func @_mlp_kernel(%arg0: i32, %arg1: memref<8x784xf32, #tpu.memory_space<vmem>>, %arg2: memref<784x512xf32, #tpu.memory_space<vmem>>, %arg3: memref<1x512xf32, #tpu.memory_space<vmem>>, %arg4: memref<512x512xf32, #tpu.memory_space<vmem>>, %arg5: memref<1x512xf32, #tpu.memory_space<vmem>>, %arg6: memref<512x128xf32, #tpu.memory_space<vmem>>, %arg7: memref<1x128xf32, #tpu.memory_space<vmem>>, %arg8: memref<8x128xf32, #tpu.memory_space<vmem>>) attributes {dimension_semantics = [#tpu.dimension_semantics<parallel>], iteration_bounds = array<i64: 1>, scalar_prefetch = 0 : i64, scratch_operands = 0 : i64, tpu.core_type = #tpu.core_type<tc>, window_params = [{transform_indices = @transform_0, window_bounds = array<i64: 8, 784>}, {pipeline_mode = #tpu.pipeline_mode<synchronous>, transform_indices = @transform_1, window_bounds = array<i64: 784, 512>}, {pipeline_mode = #tpu.pipeline_mode<synchronous>, transform_indices = @transform_2, window_bounds = array<i64: 1, 512>}, {pipeline_mode = #tpu.pipeline_mode<synchronous>, transform_indices = @transform_3, window_bounds = array<i64: 512, 512>}, {pipeline_mode = #tpu.pipeline_mode<synchronous>, transform_indices = @transform_4, window_bounds = array<i64: 1, 512>}, {pipeline_mode = #tpu.pipeline_mode<synchronous>, transform_indices = @transform_5, window_bounds = array<i64: 512, 128>}, {pipeline_mode = #tpu.pipeline_mode<synchronous>, transform_indices = @transform_6, window_bounds = array<i64: 1, 128>}, {transform_indices = @transform_7, window_bounds = array<i64: 8, 128>}]} {
    %c0 = arith.constant 0 : index
    %c0_0 = arith.constant 0 : index
    %0 = vector.load %arg1[%c0, %c0_0] : memref<8x784xf32, #tpu.memory_space<vmem>>, vector<8x784xf32>
    %c0_1 = arith.constant 0 : index
    %c0_2 = arith.constant 0 : index
    %1 = vector.load %arg2[%c0_1, %c0_2] : memref<784x512xf32, #tpu.memory_space<vmem>>, vector<784x512xf32>
    %cst = arith.constant dense<0.000000e+00> : vector<8x512xf32>
    %2 = tpu.matmul %0, %1, %cst {dimension_numbers = #tpu.dot_dimension_numbers<[1], [0], [0], [1], [0, 0, 1, 1], [], []>} : vector<8x784xf32>, vector<784x512xf32>, vector<8x512xf32> -> vector<8x512xf32>
    %c0_3 = arith.constant 0 : index
    %c0_4 = arith.constant 0 : index
    %3 = vector.load %arg3[%c0_3, %c0_4] : memref<1x512xf32, #tpu.memory_space<vmem>>, vector<1x512xf32>
    %4 = vector.broadcast %3 : vector<1x512xf32> to vector<8x512xf32>
    %5 = arith.addf %2, %4 : vector<8x512xf32>
    %cst_5 = arith.constant 0.000000e+00 : f32
    %6 = vector.broadcast %cst_5 : f32 to vector<8x512xf32>
    %7 = arith.maximumf %5, %6 : vector<8x512xf32>
    %c0_6 = arith.constant 0 : index
    %c0_7 = arith.constant 0 : index
    %8 = vector.load %arg4[%c0_6, %c0_7] : memref<512x512xf32, #tpu.memory_space<vmem>>, vector<512x512xf32>
    %cst_8 = arith.constant dense<0.000000e+00> : vector<8x512xf32>
    %9 = tpu.matmul %7, %8, %cst_8 {dimension_numbers = #tpu.dot_dimension_numbers<[1], [0], [0], [1], [0, 0, 1, 1], [], []>} : vector<8x512xf32>, vector<512x512xf32>, vector<8x512xf32> -> vector<8x512xf32>
    %c0_9 = arith.constant 0 : index
    %c0_10 = arith.constant 0 : index
    %10 = vector.load %arg5[%c0_9, %c0_10] : memref<1x512xf32, #tpu.memory_space<vmem>>, vector<1x512xf32>
    %11 = vector.broadcast %10 : vector<1x512xf32> to vector<8x512xf32>
    %12 = arith.addf %9, %11 : vector<8x512xf32>
    %cst_11 = arith.constant 0.000000e+00 : f32
    %13 = vector.broadcast %cst_11 : f32 to vector<8x512xf32>
    %14 = arith.maximumf %12, %13 : vector<8x512xf32>
    %c0_12 = arith.constant 0 : index
    %c0_13 = arith.constant 0 : index
    %15 = vector.load %arg6[%c0_12, %c0_13] : memref<512x128xf32, #tpu.memory_space<vmem>>, vector<512x128xf32>
    %cst_14 = arith.constant dense<0.000000e+00> : vector<8x128xf32>
    %16 = tpu.matmul %14, %15, %cst_14 {dimension_numbers = #tpu.dot_dimension_numbers<[1], [0], [0], [1], [0, 0, 1, 1], [], []>} : vector<8x512xf32>, vector<512x128xf32>, vector<8x128xf32> -> vector<8x128xf32>
    %c0_15 = arith.constant 0 : index
    %c0_16 = arith.constant 0 : index
    %17 = vector.load %arg7[%c0_15, %c0_16] : memref<1x128xf32, #tpu.memory_space<vmem>>, vector<1x128xf32>
    %18 = vector.broadcast %17 : vector<1x128xf32> to vector<8x128xf32>
    %19 = arith.addf %16, %18 : vector<8x128xf32>
    %c0_17 = arith.constant 0 : index
    %c0_18 = arith.constant 0 : index
    %20 = vector.load %arg8[%c0_17, %c0_18] : memref<8x128xf32, #tpu.memory_space<vmem>>, vector<8x128xf32>
    tpu.vector_store %arg8[%c0_17, %c0_18], %19 {strides = array<i32>} : memref<8x128xf32, #tpu.memory_space<vmem>>, vector<8x128xf32>,
    return
  }
  func.func @transform_0(%arg0: i32) -> (i32, i32) {
    %c0_i32 = arith.constant 0 : i32
    %c0_i32_0 = arith.constant 0 : i32
    return %arg0, %c0_i32 : i32, i32
  }
  func.func @transform_1(%arg0: i32) -> (i32, i32) {
    %c0_i32 = arith.constant 0 : i32
    %c0_i32_0 = arith.constant 0 : i32
    %c0_i32_1 = arith.constant 0 : i32
    return %c0_i32, %c0_i32_0 : i32, i32
  }
  func.func @transform_2(%arg0: i32) -> (i32, i32) {
    %c0_i32 = arith.constant 0 : i32
    %c0_i32_0 = arith.constant 0 : i32
    %c0_i32_1 = arith.constant 0 : i32
    return %c0_i32, %c0_i32_0 : i32, i32
  }
  func.func @transform_3(%arg0: i32) -> (i32, i32) {
    %c0_i32 = arith.constant 0 : i32
    %c0_i32_0 = arith.constant 0 : i32
    %c0_i32_1 = arith.constant 0 : i32
    return %c0_i32, %c0_i32_0 : i32, i32
  }
  func.func @transform_4(%arg0: i32) -> (i32, i32) {
    %c0_i32 = arith.constant 0 : i32
    %c0_i32_0 = arith.constant 0 : i32
    %c0_i32_1 = arith.constant 0 : i32
    return %c0_i32, %c0_i32_0 : i32, i32
  }
  func.func @transform_5(%arg0: i32) -> (i32, i32) {
    %c0_i32 = arith.constant 0 : i32
    %c0_i32_0 = arith.constant 0 : i32
    %c0_i32_1 = arith.constant 0 : i32
    return %c0_i32, %c0_i32_0 : i32, i32
  }
  func.func @transform_6(%arg0: i32) -> (i32, i32) {
    %c0_i32 = arith.constant 0 : i32
    %c0_i32_0 = arith.constant 0 : i32
    %c0_i32_1 = arith.constant 0 : i32
    return %c0_i32, %c0_i32_0 : i32, i32
  }
  func.func @transform_7(%arg0: i32) -> (i32, i32) {
    %c0_i32 = arith.constant 0 : i32
    %c0_i32_0 = arith.constant 0 : i32
    return %arg0, %c0_i32 : i32, i32
  }
}

</mosaic_0001>

<llo_original>
// kernel: nn_forward.1
$region0: #{nn_forward.1}
  #allocation0 [shape = 'u32[]', space=smem, size = 0x4, offset = 0x4, fixed_abs, tag = 'smem constant byte address 0x4 - core index']
  #allocation1 [shape = 'u32[144,128]{1,0:T(1,128)}', space=vmem, size = 0x12000, scoped, tag = 'internal scratch']
  %s0 = inlined_call_operand.vmem [shape: f32[8,784], index: 0, kind: input, shape index: {}]
  %s1 = inlined_call_operand.hbm [shape: f32[784,512], index: 1, kind: input, shape index: {}]
  %s2 = inlined_call_operand.hbm [shape: f32[1,512], index: 2, kind: input, shape index: {}]
  %s3 = inlined_call_operand.hbm [shape: f32[512,512], index: 3, kind: input, shape index: {}]
  %s4 = inlined_call_operand.hbm [shape: f32[1,512], index: 4, kind: input, shape index: {}]
  %s5 = inlined_call_operand.hbm [shape: f32[512,128], index: 5, kind: input, shape index: {}]
  %s6 = inlined_call_operand.hbm [shape: f32[1,128], index: 6, kind: input, shape index: {}]
  %s7 = inlined_call_operand.hbm [shape: f32[8,128], index: 7, kind: output, shape index: {}]
  %s8 = sld [smem:[#allocation0]]
  $region62: #{nn_forward.1} parent=0
    _
  %s10 = ssub.s32 1, %s8
  %s11 = scalar_select 0, %s10, %s8
  $region1: #{nn_forward.1} parent=0
    #allocation2 [shape = 'u8[1605632]{0}', space=vmem, size = 0x188000, scoped, tag = 'input window, operand 1, single buffered']
    #allocation3 [shape = 's32[1]{0}', space=sflag, size = 0x4, scoped, tag = 'scoped memory for nn_forward.1']
    #allocation4 [shape = 's32[1]{0}', space=sflag, size = 0x4, scoped, tag = 'scoped memory for nn_forward.1']
    #allocation5 [shape = 'u8[2048]{0}', space=vmem, size = 0x800, scoped, tag = 'input window, operand 2, single buffered']
    #allocation6 [shape = 's32[1]{0}', space=sflag, size = 0x4, scoped, tag = 'scoped memory for nn_forward.1']
    #allocation7 [shape = 'u8[1048576]{0}', space=vmem, size = 0x100000, scoped, tag = 'input window, operand 3, single buffered']
    #allocation8 [shape = 'u8[2048]{0}', space=vmem, size = 0x800, scoped, tag = 'input window, operand 4, single buffered']
    #allocation9 [shape = 's32[1]{0}', space=sflag, size = 0x4, scoped, tag = 'scoped memory for nn_forward.1']
    #allocation10 [shape = 'u8[262144]{0}', space=vmem, size = 0x40000, scoped, tag = 'input window, operand 5, single buffered']
    #allocation11 [shape = 'u8[512]{0}', space=vmem, size = 0x400, scoped, tag = 'input window, operand 6, single buffered']
    #allocation12 [shape = 's32[1]{0}', space=sflag, size = 0x4, scoped, tag = 'scoped memory for nn_forward.1']
    #allocation13 [shape = 'u8[4096]{0}', space=vmem, size = 0x1000, scoped, tag = 'output window, operand 0, single buffered']
    %12 = vsyncpa [#allocation3], 0
    %13 = vsyncpa [#allocation6], 0
    %14 = vsyncpa [#allocation9], 0
    %15 = vsyncpa [#allocation12], 0
    %16 = vsyncpa [#allocation4], 0
    // Predicated region
    $region2: #{nn_forward.1} parent=1 // pred_check
      _
    $region3: #{nn_forward.1} parent=1 // pred_check_branch
      %18 = sbr.rel (0) target = $region5
    $region4: #{nn_forward.1} parent=1 // pred_region
      _
    $region5: #{nn_forward.1} parent=1 // pred_fallthru
      _
    // Predicated region
    $region6: #{nn_forward.1} parent=1 // pred_check
      _
    $region7: #{nn_forward.1} parent=1 // pred_check_branch
      %20 = sbr.rel (0) target = $region9
    $region8: #{nn_forward.1} parent=1 // pred_region
      %s22 = ssub.s32 50176, 50176
      %23 = vsyncadd [#allocation3], %s22
      %s24 = sshll.u32 [#allocation2], 4
      %s25 = int_to_ptr.vmem [resolvable:$true] %s24
      %30 = dma.hbm_to_vmem [thread:$0]  %s1, 50176, %s25, [#allocation3], 512, 512, 32
    $region9: #{nn_forward.1} parent=1 // pred_fallthru
      _
    // Predicated region
    $region10: #{nn_forward.1} parent=1 // pred_check
      _
    $region11: #{nn_forward.1} parent=1 // pred_check_branch
      %32 = sbr.rel (0) target = $region13
    $region12: #{nn_forward.1} parent=1 // pred_region
      %s34 = ssub.s32 64, 64
      %35 = vsyncadd [#allocation6], %s34
      %s37 = sshll.u32 [#allocation5], 4
      %s38 = int_to_ptr.vmem [resolvable:$true] %s37
      %40 = dma.hbm_to_vmem [thread:$0]  %s2, 64, %s38, [#allocation6]
    $region13: #{nn_forward.1} parent=1 // pred_fallthru
      _
    // Predicated region
    $region14: #{nn_forward.1} parent=1 // pred_check
      _
    $region15: #{nn_forward.1} parent=1 // pred_check_branch
      %42 = sbr.rel (0) target = $region17
    $region16: #{nn_forward.1} parent=1 // pred_region
      %s44 = ssub.s32 32768, 32768
      %45 = vsyncadd [#allocation6], %s44
      %s46 = sshll.u32 [#allocation7], 4
      %s47 = int_to_ptr.vmem [resolvable:$true] %s46
      %52 = dma.hbm_to_vmem [thread:$0]  %s3, 32768, %s47, [#allocation6], 512, 512, 32
    $region17: #{nn_forward.1} parent=1 // pred_fallthru
      _
    // Predicated region
    $region18: #{nn_forward.1} parent=1 // pred_check
      _
    $region19: #{nn_forward.1} parent=1 // pred_check_branch
      %54 = sbr.rel (0) target = $region21
    $region20: #{nn_forward.1} parent=1 // pred_region
      %s56 = ssub.s32 64, 64
      %57 = vsyncadd [#allocation9], %s56
      %s59 = sshll.u32 [#allocation8], 4
      %s60 = int_to_ptr.vmem [resolvable:$true] %s59
      %62 = dma.hbm_to_vmem [thread:$0]  %s4, 64, %s60, [#allocation9]
    $region21: #{nn_forward.1} parent=1 // pred_fallthru
      _
    // Predicated region
    $region22: #{nn_forward.1} parent=1 // pred_check
      _
    $region23: #{nn_forward.1} parent=1 // pred_check_branch
      %64 = sbr.rel (0) target = $region25
    $region24: #{nn_forward.1} parent=1 // pred_region
      %s66 = ssub.s32 8192, 8192
      %67 = vsyncadd [#allocation9], %s66
      %s68 = sshll.u32 [#allocation10], 4
      %s69 = int_to_ptr.vmem [resolvable:$true] %s68
      %74 = dma.hbm_to_vmem [thread:$0]  %s5, 8192, %s69, [#allocation9], 128, 128, 8
    $region25: #{nn_forward.1} parent=1 // pred_fallthru
      _
    // Predicated region
    $region26: #{nn_forward.1} parent=1 // pred_check
      _
    $region27: #{nn_forward.1} parent=1 // pred_check_branch
      %76 = sbr.rel (0) target = $region29
    $region28: #{nn_forward.1} parent=1 // pred_region
      %s78 = ssub.s32 16, 16
      %79 = vsyncadd [#allocation12], %s78
      %s81 = sshll.u32 [#allocation11], 4
      %s82 = int_to_ptr.vmem [resolvable:$true] %s81
      %84 = dma.hbm_to_vmem [thread:$0]  %s6, 16, %s82, [#allocation12]
    $region29: #{nn_forward.1} parent=1 // pred_fallthru
      _
    // Predicated region
    $region30: #{nn_forward.1} parent=1 // pred_check
      _
    $region31: #{nn_forward.1} parent=1 // pred_check_branch
      %86 = sbr.rel (0) target = $region33
    $region32: #{nn_forward.1} parent=1 // pred_region
      %87 = dma.done [#allocation3], 50176
    $region33: #{nn_forward.1} parent=1 // pred_fallthru
      _
    // Predicated region
    $region34: #{nn_forward.1} parent=1 // pred_check
      _
    $region35: #{nn_forward.1} parent=1 // pred_check_branch
      %89 = sbr.rel (0) target = $region37
    $region36: #{nn_forward.1} parent=1 // pred_region
      %90 = dma.done [#allocation6], 64
    $region37: #{nn_forward.1} parent=1 // pred_fallthru
      _
    // Predicated region
    $region38: #{nn_forward.1} parent=1 // pred_check
      _
    $region39: #{nn_forward.1} parent=1 // pred_check_branch
      %92 = sbr.rel (0) target = $region41
    $region40: #{nn_forward.1} parent=1 // pred_region
      %93 = dma.done [#allocation6], 32768
    $region41: #{nn_forward.1} parent=1 // pred_fallthru
      _
    // Predicated region
    $region42: #{nn_forward.1} parent=1 // pred_check
      _
    $region43: #{nn_forward.1} parent=1 // pred_check_branch
      %95 = sbr.rel (0) target = $region45
    $region44: #{nn_forward.1} parent=1 // pred_region
      %96 = dma.done [#allocation9], 64
    $region45: #{nn_forward.1} parent=1 // pred_fallthru
      _
    // Predicated region
    $region46: #{nn_forward.1} parent=1 // pred_check
      _
    $region47: #{nn_forward.1} parent=1 // pred_check_branch
      %98 = sbr.rel (0) target = $region49
    $region48: #{nn_forward.1} parent=1 // pred_region
      %99 = dma.done [#allocation9], 8192
    $region49: #{nn_forward.1} parent=1 // pred_fallthru
      _
    // Predicated region
    $region50: #{nn_forward.1} parent=1 // pred_check
      _
    $region51: #{nn_forward.1} parent=1 // pred_check_branch
      %101 = sbr.rel (0) target = $region53
    $region52: #{nn_forward.1} parent=1 // pred_region
      %102 = dma.done [#allocation12], 16
    $region53: #{nn_forward.1} parent=1 // pred_fallthru
      _
    %v103 = vld [vmem:[%s0] sm:$0xff]
    %v104 = vld [vmem:[%s0 + $0x8] sm:$0xff]
    %v105 = vld [vmem:[%s0 + $0x10] sm:$0xff]
    %v106 = vld [vmem:[%s0 + $0x18] sm:$0xff]
    %v107 = vld [vmem:[%s0 + $0x20] sm:$0xff]
    %v108 = vld [vmem:[%s0 + $0x28] sm:$0xff]
    %v109 = vld [vmem:[%s0 + $0x30] sm:$0xff]
    %v110 = vld [vmem:[#allocation2] sm:$0xff]
    %v111 = vld [vmem:[#allocation2 + $0x8] sm:$0xff]
    %v112 = vld [vmem:[#allocation2 + $0x10] sm:$0xff]
    %v113 = vld [vmem:[#allocation2 + $0x18] sm:$0xff]
    %v114 = vld [vmem:[#allocation2 + $0x20] sm:$0xff]
    %v115 = vld [vmem:[#allocation2 + $0x28] sm:$0xff]
    %v116 = vld [vmem:[#allocation2 + $0x30] sm:$0xff]
    %v117 = vld [vmem:[#allocation2 + $0x38] sm:$0xff]
    %v118 = vld [vmem:[#allocation2 + $0x40] sm:$0xff]
    %v119 = vld [vmem:[#allocation2 + $0x48] sm:$0xff]
    %v120 = vld [vmem:[#allocation2 + $0x50] sm:$0xff]
    %v121 = vld [vmem:[#allocation2 + $0x58] sm:$0xff]
    %v122 = vld [vmem:[#allocation2 + $0x60] sm:$0xff]
    %v123 = vld [vmem:[#allocation2 + $0x68] sm:$0xff]
    %v124 = vld [vmem:[#allocation2 + $0x70] sm:$0xff]
    %v125 = vld [vmem:[#allocation2 + $0x78] sm:$0xff]
    %v126 = vld [vmem:[#allocation2 + $0x80] sm:$0xff]
    %v127 = vld [vmem:[#allocation2 + $0x88] sm:$0xff]
    %v128 = vld [vmem:[#allocation2 + $0x90] sm:$0xff]
    %v129 = vld [vmem:[#allocation2 + $0x98] sm:$0xff]
    %v130 = vld [vmem:[#allocation2 + $0xa0] sm:$0xff]
    %v131 = vld [vmem:[#allocation2 + $0xa8] sm:$0xff]
    %v132 = vld [vmem:[#allocation2 + $0xb0] sm:$0xff]
    %v133 = vld [vmem:[#allocation2 + $0xb8] sm:$0xff]
    %v134 = vld [vmem:[#allocation2 + $0xc0] sm:$0xff]
    %v135 = vld [vmem:[#allocation2 + $0xc8] sm:$0xff]
    %v136 = vld [vmem:[#allocation2 + $0xd0] sm:$0xff]
    %v137 = vld [vmem:[#allocation2 + $0xd8] sm:$0xff]
    %v138 = vld [vmem:[#allocation2 + $0xe0] sm:$0xff]
    %v139 = vld [vmem:[#allocation2 + $0xe8] sm:$0xff]
    %v140 = vld [vmem:[#allocation2 + $0xf0] sm:$0xff]
    %v141 = vld [vmem:[#allocation2 + $0xf8] sm:$0xff]
    %v142 = vld [vmem:[#allocation2 + $0x100] sm:$0xff]
    %v143 = vld [vmem:[#allocation2 + $0x108] sm:$0xff]
    %v144 = vld [vmem:[#allocation2 + $0x110] sm:$0xff]
    %v145 = vld [vmem:[#allocation2 + $0x118] sm:$0xff]
    %v146 = vld [vmem:[#allocation2 + $0x120] sm:$0xff]
    %v147 = vld [vmem:[#allocation2 + $0x128] sm:$0xff]
    %v148 = vld [vmem:[#allocation2 + $0x130] sm:$0xff]
    %v149 = vld [vmem:[#allocation2 + $0x138] sm:$0xff]
    %v150 = vld [vmem:[#allocation2 + $0x140] sm:$0xff]
    %v151 = vld [vmem:[#allocation2 + $0x148] sm:$0xff]
    %v152 = vld [vmem:[#allocation2 + $0x150] sm:$0xff]
    %v153 = vld [vmem:[#allocation2 + $0x158] sm:$0xff]
    %v154 = vld [vmem:[#allocation2 + $0x160] sm:$0xff]
    %v155 = vld [vmem:[#allocation2 + $0x168] sm:$0xff]
    %v156 = vld [vmem:[#allocation2 + $0x170] sm:$0xff]
    %v157 = vld [vmem:[#allocation2 + $0x178] sm:$0xff]
    %v158 = vld [vmem:[#allocation2 + $0x180] sm:$0xff]
    %v159 = vld [vmem:[#allocation2 + $0x188] sm:$0xff]
    %v160 = vld [vmem:[#allocation2 + $0x190] sm:$0xff]
    %v161 = vld [vmem:[#allocation2 + $0x198] sm:$0xff]
    %v162 = vld [vmem:[#allocation2 + $0x1a0] sm:$0xff]
    %v163 = vld [vmem:[#allocation2 + $0x1a8] sm:$0xff]
    %v164 = vld [vmem:[#allocation2 + $0x1b0] sm:$0xff]
    %v165 = vld [vmem:[#allocation2 + $0x1b8] sm:$0xff]
    %v166 = vld [vmem:[#allocation2 + $0x1c0] sm:$0xff]
    %v167 = vld [vmem:[#allocation2 + $0x1c8] sm:$0xff]
    %v168 = vld [vmem:[#allocation2 + $0x1d0] sm:$0xff]
    %v169 = vld [vmem:[#allocation2 + $0x1d8] sm:$0xff]
    %v170 = vld [vmem:[#allocation2 + $0x1e0] sm:$0xff]
    %v171 = vld [vmem:[#allocation2 + $0x1e8] sm:$0xff]
    %v172 = vld [vmem:[#allocation2 + $0x1f0] sm:$0xff]
    %v173 = vld [vmem:[#allocation2 + $0x1f8] sm:$0xff]
    %v174 = vld [vmem:[#allocation2 + $0x200] sm:$0xff]
    %v175 = vld [vmem:[#allocation2 + $0x208] sm:$0xff]
    %v176 = vld [vmem:[#allocation2 + $0x210] sm:$0xff]
    %v177 = vld [vmem:[#allocation2 + $0x218] sm:$0xff]
    %v178 = vld [vmem:[#allocation2 + $0x220] sm:$0xff]
    %v179 = vld [vmem:[#allocation2 + $0x228] sm:$0xff]
    %v180 = vld [vmem:[#allocation2 + $0x230] sm:$0xff]
    %v181 = vld [vmem:[#allocation2 + $0x238] sm:$0xff]
    %v182 = vld [vmem:[#allocation2 + $0x240] sm:$0xff]
    %v183 = vld [vmem:[#allocation2 + $0x248] sm:$0xff]
    %v184 = vld [vmem:[#allocation2 + $0x250] sm:$0xff]
    %v185 = vld [vmem:[#allocation2 + $0x258] sm:$0xff]
    %v186 = vld [vmem:[#allocation2 + $0x260] sm:$0xff]
    %v187 = vld [vmem:[#allocation2 + $0x268] sm:$0xff]
    %v188 = vld [vmem:[#allocation2 + $0x270] sm:$0xff]
    %v189 = vld [vmem:[#allocation2 + $0x278] sm:$0xff]
    %v190 = vld [vmem:[#allocation2 + $0x280] sm:$0xff]
    %v191 = vld [vmem:[#allocation2 + $0x288] sm:$0xff]
    %v192 = vld [vmem:[#allocation2 + $0x290] sm:$0xff]
    %v193 = vld [vmem:[#allocation2 + $0x298] sm:$0xff]
    %v194 = vld [vmem:[#allocation2 + $0x2a0] sm:$0xff]
    %v195 = vld [vmem:[#allocation2 + $0x2a8] sm:$0xff]
    %v196 = vld [vmem:[#allocation2 + $0x2b0] sm:$0xff]
    %v197 = vld [vmem:[#allocation2 + $0x2b8] sm:$0xff]
    %v198 = vld [vmem:[#allocation2 + $0x2c0] sm:$0xff]
    %v199 = vld [vmem:[#allocation2 + $0x2c8] sm:$0xff]
    %v200 = vld [vmem:[#allocation2 + $0x2d0] sm:$0xff]
    %v201 = vld [vmem:[#allocation2 + $0x2d8] sm:$0xff]
    %v202 = vld [vmem:[#allocation2 + $0x2e0] sm:$0xff]
    %v203 = vld [vmem:[#allocation2 + $0x2e8] sm:$0xff]
    %v204 = vld [vmem:[#allocation2 + $0x2f0] sm:$0xff]
    %v205 = vld [vmem:[#allocation2 + $0x2f8] sm:$0xff]
    %v206 = vld [vmem:[#allocation2 + $0x300] sm:$0xff]
    %v207 = vld [vmem:[#allocation2 + $0x308] sm:$0xff]
    %v208 = vld [vmem:[#allocation2 + $0x310] sm:$0xff]
    %v209 = vld [vmem:[#allocation2 + $0x318] sm:$0xff]
    %v210 = vld [vmem:[#allocation2 + $0x320] sm:$0xff]
    %v211 = vld [vmem:[#allocation2 + $0x328] sm:$0xff]
    %v212 = vld [vmem:[#allocation2 + $0x330] sm:$0xff]
    %v213 = vld [vmem:[#allocation2 + $0x338] sm:$0xff]
    %v214 = vld [vmem:[#allocation2 + $0x340] sm:$0xff]
    %v215 = vld [vmem:[#allocation2 + $0x348] sm:$0xff]
    %v216 = vld [vmem:[#allocation2 + $0x350] sm:$0xff]
    %v217 = vld [vmem:[#allocation2 + $0x358] sm:$0xff]
    %v218 = vld [vmem:[#allocation2 + $0x360] sm:$0xff]
    %v219 = vld [vmem:[#allocation2 + $0x368] sm:$0xff]
    %v220 = vld [vmem:[#allocation2 + $0x370] sm:$0xff]
    %v221 = vld [vmem:[#allocation2 + $0x378] sm:$0xff]
    %v222 = vld [vmem:[#allocation2 + $0x380] sm:$0xff]
    %v223 = vld [vmem:[#allocation2 + $0x388] sm:$0xff]
    %v224 = vld [vmem:[#allocation2 + $0x390] sm:$0xff]
    %v225 = vld [vmem:[#allocation2 + $0x398] sm:$0xff]
    %v226 = vld [vmem:[#allocation2 + $0x3a0] sm:$0xff]
    %v227 = vld [vmem:[#allocation2 + $0x3a8] sm:$0xff]
    %v228 = vld [vmem:[#allocation2 + $0x3b0] sm:$0xff]
    %v229 = vld [vmem:[#allocation2 + $0x3b8] sm:$0xff]
    %v230 = vld [vmem:[#allocation2 + $0x3c0] sm:$0xff]
    %v231 = vld [vmem:[#allocation2 + $0x3c8] sm:$0xff]
    %v232 = vld [vmem:[#allocation2 + $0x3d0] sm:$0xff]
    %v233 = vld [vmem:[#allocation2 + $0x3d8] sm:$0xff]
    %v234 = vld [vmem:[#allocation2 + $0x3e0] sm:$0xff]
    %v235 = vld [vmem:[#allocation2 + $0x3e8] sm:$0xff]
    %v236 = vld [vmem:[#allocation2 + $0x3f0] sm:$0xff]
    %v237 = vld [vmem:[#allocation2 + $0x3f8] sm:$0xff]
    %v238 = vld [vmem:[#allocation2 + $0x400] sm:$0xff]
    %v239 = vld [vmem:[#allocation2 + $0x408] sm:$0xff]
    %v240 = vld [vmem:[#allocation2 + $0x410] sm:$0xff]
    %v241 = vld [vmem:[#allocation2 + $0x418] sm:$0xff]
    %v242 = vld [vmem:[#allocation2 + $0x420] sm:$0xff]
    %v243 = vld [vmem:[#allocation2 + $0x428] sm:$0xff]
    %v244 = vld [vmem:[#allocation2 + $0x430] sm:$0xff]
    %v245 = vld [vmem:[#allocation2 + $0x438] sm:$0xff]
    %v246 = vld [vmem:[#allocation2 + $0x440] sm:$0xff]
    %v247 = vld [vmem:[#allocation2 + $0x448] sm:$0xff]
    %v248 = vld [vmem:[#allocation2 + $0x450] sm:$0xff]
    %v249 = vld [vmem:[#allocation2 + $0x458] sm:$0xff]
    %v250 = vld [vmem:[#allocation2 + $0x460] sm:$0xff]
    %v251 = vld [vmem:[#allocation2 + $0x468] sm:$0xff]
    %v252 = vld [vmem:[#allocation2 + $0x470] sm:$0xff]
    %v253 = vld [vmem:[#allocation2 + $0x478] sm:$0xff]
    %v254 = vld [vmem:[#allocation2 + $0x480] sm:$0xff]
    %v255 = vld [vmem:[#allocation2 + $0x488] sm:$0xff]
    %v256 = vld [vmem:[#allocation2 + $0x490] sm:$0xff]
    %v257 = vld [vmem:[#allocation2 + $0x498] sm:$0xff]
    %v258 = vld [vmem:[#allocation2 + $0x4a0] sm:$0xff]
    %v259 = vld [vmem:[#allocation2 + $0x4a8] sm:$0xff]
    %v260 = vld [vmem:[#allocation2 + $0x4b0] sm:$0xff]
    %v261 = vld [vmem:[#allocation2 + $0x4b8] sm:$0xff]
    %v262 = vld [vmem:[#allocation2 + $0x4c0] sm:$0xff]
    %v263 = vld [vmem:[#allocation2 + $0x4c8] sm:$0xff]
    %v264 = vld [vmem:[#allocation2 + $0x4d0] sm:$0xff]
    %v265 = vld [vmem:[#allocation2 + $0x4d8] sm:$0xff]
    %v266 = vld [vmem:[#allocation2 + $0x4e0] sm:$0xff]
    %v267 = vld [vmem:[#allocation2 + $0x4e8] sm:$0xff]
    %v268 = vld [vmem:[#allocation2 + $0x4f0] sm:$0xff]
    %v269 = vld [vmem:[#allocation2 + $0x4f8] sm:$0xff]
    %v270 = vld [vmem:[#allocation2 + $0x500] sm:$0xff]
    %v271 = vld [vmem:[#allocation2 + $0x508] sm:$0xff]
    %v272 = vld [vmem:[#allocation2 + $0x510] sm:$0xff]
    %v273 = vld [vmem:[#allocation2 + $0x518] sm:$0xff]
    %v274 = vld [vmem:[#allocation2 + $0x520] sm:$0xff]
    %v275 = vld [vmem:[#allocation2 + $0x528] sm:$0xff]
    %v276 = vld [vmem:[#allocation2 + $0x530] sm:$0xff]
    %v277 = vld [vmem:[#allocation2 + $0x538] sm:$0xff]
    %v278 = vld [vmem:[#allocation2 + $0x540] sm:$0xff]
    %v279 = vld [vmem:[#allocation2 + $0x548] sm:$0xff]
    %v280 = vld [vmem:[#allocation2 + $0x550] sm:$0xff]
    %v281 = vld [vmem:[#allocation2 + $0x558] sm:$0xff]
    %v282 = vld [vmem:[#allocation2 + $0x560] sm:$0xff]
    %v283 = vld [vmem:[#allocation2 + $0x568] sm:$0xff]
    %v284 = vld [vmem:[#allocation2 + $0x570] sm:$0xff]
    %v285 = vld [vmem:[#allocation2 + $0x578] sm:$0xff]
    %v286 = vld [vmem:[#allocation2 + $0x580] sm:$0xff]
    %v287 = vld [vmem:[#allocation2 + $0x588] sm:$0xff]
    %v288 = vld [vmem:[#allocation2 + $0x590] sm:$0xff]
    %v289 = vld [vmem:[#allocation2 + $0x598] sm:$0xff]
    %v290 = vld [vmem:[#allocation2 + $0x5a0] sm:$0xff]
    %v291 = vld [vmem:[#allocation2 + $0x5a8] sm:$0xff]
    %v292 = vld [vmem:[#allocation2 + $0x5b0] sm:$0xff]
    %v293 = vld [vmem:[#allocation2 + $0x5b8] sm:$0xff]
    %v294 = vld [vmem:[#allocation2 + $0x5c0] sm:$0xff]
    %v295 = vld [vmem:[#allocation2 + $0x5c8] sm:$0xff]
    %v296 = vld [vmem:[#allocation2 + $0x5d0] sm:$0xff]
    %v297 = vld [vmem:[#allocation2 + $0x5d8] sm:$0xff]
    %v298 = vld [vmem:[#allocation2 + $0x5e0] sm:$0xff]
    %v299 = vld [vmem:[#allocation2 + $0x5e8] sm:$0xff]
    %v300 = vld [vmem:[#allocation2 + $0x5f0] sm:$0xff]
    %v301 = vld [vmem:[#allocation2 + $0x5f8] sm:$0xff]
    %v302 = vld [vmem:[#allocation2 + $0x600] sm:$0xff]
    %v303 = vld [vmem:[#allocation2 + $0x608] sm:$0xff]
    %v304 = vld [vmem:[#allocation2 + $0x610] sm:$0xff]
    %v305 = vld [vmem:[#allocation2 + $0x618] sm:$0xff]
    %v306 = vld [vmem:[#allocation2 + $0x620] sm:$0xff]
    %v307 = vld [vmem:[#allocation2 + $0x628] sm:$0xff]
    %v308 = vld [vmem:[#allocation2 + $0x630] sm:$0xff]
    %v309 = vld [vmem:[#allocation2 + $0x638] sm:$0xff]
    %v310 = vld [vmem:[#allocation2 + $0x640] sm:$0xff]
    %v311 = vld [vmem:[#allocation2 + $0x648] sm:$0xff]
    %v312 = vld [vmem:[#allocation2 + $0x650] sm:$0xff]
    %v313 = vld [vmem:[#allocation2 + $0x658] sm:$0xff]
    %v314 = vld [vmem:[#allocation2 + $0x660] sm:$0xff]
    %v315 = vld [vmem:[#allocation2 + $0x668] sm:$0xff]
    %v316 = vld [vmem:[#allocation2 + $0x670] sm:$0xff]
    %v317 = vld [vmem:[#allocation2 + $0x678] sm:$0xff]
    %v318 = vld [vmem:[#allocation2 + $0x680] sm:$0xff]
    %v319 = vld [vmem:[#allocation2 + $0x688] sm:$0xff]
    %v320 = vld [vmem:[#allocation2 + $0x690] sm:$0xff]
    %v321 = vld [vmem:[#allocation2 + $0x698] sm:$0xff]
    %v322 = vld [vmem:[#allocation2 + $0x6a0] sm:$0xff]
    %v323 = vld [vmem:[#allocation2 + $0x6a8] sm:$0xff]
    %v324 = vld [vmem:[#allocation2 + $0x6b0] sm:$0xff]
    %v325 = vld [vmem:[#allocation2 + $0x6b8] sm:$0xff]
    %v326 = vld [vmem:[#allocation2 + $0x6c0] sm:$0xff]
    %v327 = vld [vmem:[#allocation2 + $0x6c8] sm:$0xff]
    %v328 = vld [vmem:[#allocation2 + $0x6d0] sm:$0xff]
    %v329 = vld [vmem:[#allocation2 + $0x6d8] sm:$0xff]
    %v330 = vld [vmem:[#allocation2 + $0x6e0] sm:$0xff]
    %v331 = vld [vmem:[#allocation2 + $0x6e8] sm:$0xff]
    %v332 = vld [vmem:[#allocation2 + $0x6f0] sm:$0xff]
    %v333 = vld [vmem:[#allocation2 + $0x6f8] sm:$0xff]
    %v334 = vld [vmem:[#allocation2 + $0x700] sm:$0xff]
    %v335 = vld [vmem:[#allocation2 + $0x708] sm:$0xff]
    %v336 = vld [vmem:[#allocation2 + $0x710] sm:$0xff]
    %v337 = vld [vmem:[#allocation2 + $0x718] sm:$0xff]
    %v338 = vld [vmem:[#allocation2 + $0x720] sm:$0xff]
    %v339 = vld [vmem:[#allocation2 + $0x728] sm:$0xff]
    %v340 = vld [vmem:[#allocation2 + $0x730] sm:$0xff]
    %v341 = vld [vmem:[#allocation2 + $0x738] sm:$0xff]
    %v342 = vld [vmem:[#allocation2 + $0x740] sm:$0xff]
    %v343 = vld [vmem:[#allocation2 + $0x748] sm:$0xff]
    %v344 = vld [vmem:[#allocation2 + $0x750] sm:$0xff]
    %v345 = vld [vmem:[#allocation2 + $0x758] sm:$0xff]
    %v346 = vld [vmem:[#allocation2 + $0x760] sm:$0xff]
    %v347 = vld [vmem:[#allocation2 + $0x768] sm:$0xff]
    %v348 = vld [vmem:[#allocation2 + $0x770] sm:$0xff]
    %v349 = vld [vmem:[#allocation2 + $0x778] sm:$0xff]
    %v350 = vld [vmem:[#allocation2 + $0x780] sm:$0xff]
    %v351 = vld [vmem:[#allocation2 + $0x788] sm:$0xff]
    %v352 = vld [vmem:[#allocation2 + $0x790] sm:$0xff]
    %v353 = vld [vmem:[#allocation2 + $0x798] sm:$0xff]
    %v354 = vld [vmem:[#allocation2 + $0x7a0] sm:$0xff]
    %v355 = vld [vmem:[#allocation2 + $0x7a8] sm:$0xff]
    %v356 = vld [vmem:[#allocation2 + $0x7b0] sm:$0xff]
    %v357 = vld [vmem:[#allocation2 + $0x7b8] sm:$0xff]
    %v358 = vld [vmem:[#allocation2 + $0x7c0] sm:$0xff]
    %v359 = vld [vmem:[#allocation2 + $0x7c8] sm:$0xff]
    %v360 = vld [vmem:[#allocation2 + $0x7d0] sm:$0xff]
    %v361 = vld [vmem:[#allocation2 + $0x7d8] sm:$0xff]
    %v362 = vld [vmem:[#allocation2 + $0x7e0] sm:$0xff]
    %v363 = vld [vmem:[#allocation2 + $0x7e8] sm:$0xff]
    %v364 = vld [vmem:[#allocation2 + $0x7f0] sm:$0xff]
    %v365 = vld [vmem:[#allocation2 + $0x7f8] sm:$0xff]
    %v366 = vld [vmem:[#allocation2 + $0x800] sm:$0xff]
    %v367 = vld [vmem:[#allocation2 + $0x808] sm:$0xff]
    %v368 = vld [vmem:[#allocation2 + $0x810] sm:$0xff]
    %v369 = vld [vmem:[#allocation2 + $0x818] sm:$0xff]
    %v370 = vld [vmem:[#allocation2 + $0x820] sm:$0xff]
    %v371 = vld [vmem:[#allocation2 + $0x828] sm:$0xff]
    %v372 = vld [vmem:[#allocation2 + $0x830] sm:$0xff]
    %v373 = vld [vmem:[#allocation2 + $0x838] sm:$0xff]
    %v374 = vld [vmem:[#allocation2 + $0x840] sm:$0xff]
    %v375 = vld [vmem:[#allocation2 + $0x848] sm:$0xff]
    %v376 = vld [vmem:[#allocation2 + $0x850] sm:$0xff]
    %v377 = vld [vmem:[#allocation2 + $0x858] sm:$0xff]
    %v378 = vld [vmem:[#allocation2 + $0x860] sm:$0xff]
    %v379 = vld [vmem:[#allocation2 + $0x868] sm:$0xff]
    %v380 = vld [vmem:[#allocation2 + $0x870] sm:$0xff]
    %v381 = vld [vmem:[#allocation2 + $0x878] sm:$0xff]
    %v382 = vld [vmem:[#allocation2 + $0x880] sm:$0xff]
    %v383 = vld [vmem:[#allocation2 + $0x888] sm:$0xff]
    %v384 = vld [vmem:[#allocation2 + $0x890] sm:$0xff]
    %v385 = vld [vmem:[#allocation2 + $0x898] sm:$0xff]
    %v386 = vld [vmem:[#allocation2 + $0x8a0] sm:$0xff]
    %v387 = vld [vmem:[#allocation2 + $0x8a8] sm:$0xff]
    %v388 = vld [vmem:[#allocation2 + $0x8b0] sm:$0xff]
    %v389 = vld [vmem:[#allocation2 + $0x8b8] sm:$0xff]
    %v390 = vld [vmem:[#allocation2 + $0x8c0] sm:$0xff]
    %v391 = vld [vmem:[#allocation2 + $0x8c8] sm:$0xff]
    %v392 = vld [vmem:[#allocation2 + $0x8d0] sm:$0xff]
    %v393 = vld [vmem:[#allocation2 + $0x8d8] sm:$0xff]
    %v394 = vld [vmem:[#allocation2 + $0x8e0] sm:$0xff]
    %v395 = vld [vmem:[#allocation2 + $0x8e8] sm:$0xff]
    %v396 = vld [vmem:[#allocation2 + $0x8f0] sm:$0xff]
    %v397 = vld [vmem:[#allocation2 + $0x8f8] sm:$0xff]
    %v398 = vld [vmem:[#allocation2 + $0x900] sm:$0xff]
    %v399 = vld [vmem:[#allocation2 + $0x908] sm:$0xff]
    %v400 = vld [vmem:[#allocation2 + $0x910] sm:$0xff]
    %v401 = vld [vmem:[#allocation2 + $0x918] sm:$0xff]
    %v402 = vld [vmem:[#allocation2 + $0x920] sm:$0xff]
    %v403 = vld [vmem:[#allocation2 + $0x928] sm:$0xff]
    %v404 = vld [vmem:[#allocation2 + $0x930] sm:$0xff]
    %v405 = vld [vmem:[#allocation2 + $0x938] sm:$0xff]
    %v406 = vld [vmem:[#allocation2 + $0x940] sm:$0xff]
    %v407 = vld [vmem:[#allocation2 + $0x948] sm:$0xff]
    %v408 = vld [vmem:[#allocation2 + $0x950] sm:$0xff]
    %v409 = vld [vmem:[#allocation2 + $0x958] sm:$0xff]
    %v410 = vld [vmem:[#allocation2 + $0x960] sm:$0xff]
    %v411 = vld [vmem:[#allocation2 + $0x968] sm:$0xff]
    %v412 = vld [vmem:[#allocation2 + $0x970] sm:$0xff]
    %v413 = vld [vmem:[#allocation2 + $0x978] sm:$0xff]
    %v414 = vld [vmem:[#allocation2 + $0x980] sm:$0xff]
    %v415 = vld [vmem:[#allocation2 + $0x988] sm:$0xff]
    %v416 = vld [vmem:[#allocation2 + $0x990] sm:$0xff]
    %v417 = vld [vmem:[#allocation2 + $0x998] sm:$0xff]
    %v418 = vld [vmem:[#allocation2 + $0x9a0] sm:$0xff]
    %v419 = vld [vmem:[#allocation2 + $0x9a8] sm:$0xff]
    %v420 = vld [vmem:[#allocation2 + $0x9b0] sm:$0xff]
    %v421 = vld [vmem:[#allocation2 + $0x9b8] sm:$0xff]
    %v422 = vld [vmem:[#allocation2 + $0x9c0] sm:$0xff]
    %v423 = vld [vmem:[#allocation2 + $0x9c8] sm:$0xff]
    %v424 = vld [vmem:[#allocation2 + $0x9d0] sm:$0xff]
    %v425 = vld [vmem:[#allocation2 + $0x9d8] sm:$0xff]
    %v426 = vld [vmem:[#allocation2 + $0x9e0] sm:$0xff]
    %v427 = vld [vmem:[#allocation2 + $0x9e8] sm:$0xff]
    %v428 = vld [vmem:[#allocation2 + $0x9f0] sm:$0xff]
    %v429 = vld [vmem:[#allocation2 + $0x9f8] sm:$0xff]
    %v430 = vld [vmem:[#allocation2 + $0xa00] sm:$0xff]
    %v431 = vld [vmem:[#allocation2 + $0xa08] sm:$0xff]
    %v432 = vld [vmem:[#allocation2 + $0xa10] sm:$0xff]
    %v433 = vld [vmem:[#allocation2 + $0xa18] sm:$0xff]
    %v434 = vld [vmem:[#allocation2 + $0xa20] sm:$0xff]
    %v435 = vld [vmem:[#allocation2 + $0xa28] sm:$0xff]
    %v436 = vld [vmem:[#allocation2 + $0xa30] sm:$0xff]
    %v437 = vld [vmem:[#allocation2 + $0xa38] sm:$0xff]
    %v438 = vld [vmem:[#allocation2 + $0xa40] sm:$0xff]
    %v439 = vld [vmem:[#allocation2 + $0xa48] sm:$0xff]
    %v440 = vld [vmem:[#allocation2 + $0xa50] sm:$0xff]
    %v441 = vld [vmem:[#allocation2 + $0xa58] sm:$0xff]
    %v442 = vld [vmem:[#allocation2 + $0xa60] sm:$0xff]
    %v443 = vld [vmem:[#allocation2 + $0xa68] sm:$0xff]
    %v444 = vld [vmem:[#allocation2 + $0xa70] sm:$0xff]
    %v445 = vld [vmem:[#allocation2 + $0xa78] sm:$0xff]
    %v446 = vld [vmem:[#allocation2 + $0xa80] sm:$0xff]
    %v447 = vld [vmem:[#allocation2 + $0xa88] sm:$0xff]
    %v448 = vld [vmem:[#allocation2 + $0xa90] sm:$0xff]
    %v449 = vld [vmem:[#allocation2 + $0xa98] sm:$0xff]
    %v450 = vld [vmem:[#allocation2 + $0xaa0] sm:$0xff]
    %v451 = vld [vmem:[#allocation2 + $0xaa8] sm:$0xff]
    %v452 = vld [vmem:[#allocation2 + $0xab0] sm:$0xff]
    %v453 = vld [vmem:[#allocation2 + $0xab8] sm:$0xff]
    %v454 = vld [vmem:[#allocation2 + $0xac0] sm:$0xff]
    %v455 = vld [vmem:[#allocation2 + $0xac8] sm:$0xff]
    %v456 = vld [vmem:[#allocation2 + $0xad0] sm:$0xff]
    %v457 = vld [vmem:[#allocation2 + $0xad8] sm:$0xff]
    %v458 = vld [vmem:[#allocation2 + $0xae0] sm:$0xff]
    %v459 = vld [vmem:[#allocation2 + $0xae8] sm:$0xff]
    %v460 = vld [vmem:[#allocation2 + $0xaf0] sm:$0xff]
    %v461 = vld [vmem:[#allocation2 + $0xaf8] sm:$0xff]
    %v462 = vld [vmem:[#allocation2 + $0xb00] sm:$0xff]
    %v463 = vld [vmem:[#allocation2 + $0xb08] sm:$0xff]
    %v464 = vld [vmem:[#allocation2 + $0xb10] sm:$0xff]
    %v465 = vld [vmem:[#allocation2 + $0xb18] sm:$0xff]
    %v466 = vld [vmem:[#allocation2 + $0xb20] sm:$0xff]
    %v467 = vld [vmem:[#allocation2 + $0xb28] sm:$0xff]
    %v468 = vld [vmem:[#allocation2 + $0xb30] sm:$0xff]
    %v469 = vld [vmem:[#allocation2 + $0xb38] sm:$0xff]
    %v470 = vld [vmem:[#allocation2 + $0xb40] sm:$0xff]
    %v471 = vld [vmem:[#allocation2 + $0xb48] sm:$0xff]
    %v472 = vld [vmem:[#allocation2 + $0xb50] sm:$0xff]
    %v473 = vld [vmem:[#allocation2 + $0xb58] sm:$0xff]
    %v474 = vld [vmem:[#allocation2 + $0xb60] sm:$0xff]
    %v475 = vld [vmem:[#allocation2 + $0xb68] sm:$0xff]
    %v476 = vld [vmem:[#allocation2 + $0xb70] sm:$0xff]
    %v477 = vld [vmem:[#allocation2 + $0xb78] sm:$0xff]
    %v478 = vld [vmem:[#allocation2 + $0xb80] sm:$0xff]
    %v479 = vld [vmem:[#allocation2 + $0xb88] sm:$0xff]
    %v480 = vld [vmem:[#allocation2 + $0xb90] sm:$0xff]
    %v481 = vld [vmem:[#allocation2 + $0xb98] sm:$0xff]
    %v482 = vld [vmem:[#allocation2 + $0xba0] sm:$0xff]
    %v483 = vld [vmem:[#allocation2 + $0xba8] sm:$0xff]
    %v484 = vld [vmem:[#allocation2 + $0xbb0] sm:$0xff]
    %v485 = vld [vmem:[#allocation2 + $0xbb8] sm:$0xff]
    %v486 = vld [vmem:[#allocation2 + $0xbc0] sm:$0xff]
    %v487 = vld [vmem:[#allocation2 + $0xbc8] sm:$0xff]
    %v488 = vld [vmem:[#allocation2 + $0xbd0] sm:$0xff]
    %v489 = vld [vmem:[#allocation2 + $0xbd8] sm:$0xff]
    %v490 = vld [vmem:[#allocation2 + $0xbe0] sm:$0xff]
    %v491 = vld [vmem:[#allocation2 + $0xbe8] sm:$0xff]
    %v492 = vld [vmem:[#allocation2 + $0xbf0] sm:$0xff]
    %v493 = vld [vmem:[#allocation2 + $0xbf8] sm:$0xff]
    %v494 = vld [vmem:[#allocation2 + $0xc00] sm:$0xff]
    %v495 = vld [vmem:[#allocation2 + $0xc08] sm:$0xff]
    %v496 = vld [vmem:[#allocation2 + $0xc10] sm:$0xff]
    %v497 = vld [vmem:[#allocation2 + $0xc18] sm:$0xff]
    %v498 = vld [vmem:[#allocation2 + $0xc20] sm:$0xff]
    %v499 = vld [vmem:[#allocation2 + $0xc28] sm:$0xff]
    %v500 = vld [vmem:[#allocation2 + $0xc30] sm:$0xff]
    %v501 = vld [vmem:[#allocation2 + $0xc38] sm:$0xff]
    %v502 = vld [vmem:[#allocation5] sm:$0xf]
    %v504 = vlaneseq
    %v505 = vshrl.u32 %v504, 7
    %v506 = vsub.s32 0, %v505
    %v507 = vrot.slane %v502, %v506
    %v508 = vlaneseq
    %v509 = vshrl.u32 %v508, 7
    %v510 = vsub.s32 1, %v509
    %v511 = vrot.slane %v502, %v510
    %v512 = vlaneseq
    %v513 = vshrl.u32 %v512, 7
    %v514 = vsub.s32 2, %v513
    %v515 = vrot.slane %v502, %v514
    %v516 = vlaneseq
    %v517 = vshrl.u32 %v516, 7
    %v518 = vsub.s32 3, %v517
    %v519 = vrot.slane %v502, %v518
    %vm524 = vcmask 130048
    %v526 = vsel %vm524, %v109, 0
    %528 = vmatprep.subr.mxu0 %v171
    %529 = vmatpush1.msra.mxu0 %v170
    %530 = vmatprep.subr.mxu0 %v167
    %531 = vmatpush1.msra.mxu0 %v166
    %532 = vmatprep.subr.mxu0 %v163
    %533 = vmatpush1.msra.mxu0 %v162
    %534 = vmatprep.subr.mxu0 %v159
    %535 = vmatpush1.msra.mxu0 %v158
    %536 = vmatprep.subr.mxu0 %v155
    %537 = vmatpush1.msra.mxu0 %v154
    %538 = vmatprep.subr.mxu0 %v151
    %539 = vmatpush1.msra.mxu0 %v150
    %540 = vmatprep.subr.mxu0 %v147
    %541 = vmatpush1.msra.mxu0 %v146
    %542 = vmatprep.subr.mxu0 %v143
    %543 = vmatpush1.msra.mxu0 %v142
    %544 = vmatprep.subr.mxu0 %v139
    %545 = vmatpush1.msra.mxu0 %v138
    %546 = vmatprep.subr.mxu0 %v135
    %547 = vmatpush1.msra.mxu0 %v134
    %548 = vmatprep.subr.mxu0 %v131
    %549 = vmatpush1.msra.mxu0 %v130
    %550 = vmatprep.subr.mxu0 %v127
    %551 = vmatpush1.msra.mxu0 %v126
    %552 = vmatprep.subr.mxu0 %v123
    %553 = vmatpush1.msra.mxu0 %v122
    %554 = vmatprep.subr.mxu0 %v119
    %555 = vmatpush1.msra.mxu0 %v118
    %556 = vmatprep.subr.mxu0 %v115
    %557 = vmatpush1.msra.mxu0 %v114
    %558 = vmatprep.subr.mxu0 %v111
    %559 = vmatpush1.msra.mxu0 %v110
    %560 = vmatprep.subr.mxu0 %v235
    %561 = vmatpush2.msra.mxu0 %v234
    %562 = vmatprep.subr.mxu0 %v231
    %563 = vmatpush2.msra.mxu0 %v230
    %564 = vmatprep.subr.mxu0 %v227
    %565 = vmatpush2.msra.mxu0 %v226
    %566 = vmatprep.subr.mxu0 %v223
    %567 = vmatpush2.msra.mxu0 %v222
    %568 = vmatprep.subr.mxu0 %v219
    %569 = vmatpush2.msra.mxu0 %v218
    %570 = vmatprep.subr.mxu0 %v215
    %571 = vmatpush2.msra.mxu0 %v214
    %572 = vmatprep.subr.mxu0 %v211
    %573 = vmatpush2.msra.mxu0 %v210
    %574 = vmatprep.subr.mxu0 %v207
    %575 = vmatpush2.msra.mxu0 %v206
    %576 = vmatprep.subr.mxu0 %v203
    %577 = vmatpush2.msra.mxu0 %v202
    %578 = vmatprep.subr.mxu0 %v199
    %579 = vmatpush2.msra.mxu0 %v198
    %580 = vmatprep.subr.mxu0 %v195
    %581 = vmatpush2.msra.mxu0 %v194
    %582 = vmatprep.subr.mxu0 %v191
    %583 = vmatpush2.msra.mxu0 %v190
    %584 = vmatprep.subr.mxu0 %v187
    %585 = vmatpush2.msra.mxu0 %v186
    %586 = vmatprep.subr.mxu0 %v183
    %587 = vmatpush2.msra.mxu0 %v182
    %588 = vmatprep.subr.mxu0 %v179
    %589 = vmatpush2.msra.mxu0 %v178
    %590 = vmatprep.subr.mxu0 %v175
    %591 = vmatpush2.msra.mxu0 %v174
    %592 = vmatprep.mubr.f32.mxu0 %v104
    %593 = vmatmul.mubr.f32.gmra.mxu0 %v103
    %v594 = vpop.f32.mrf.mxu0
    %v595 = vadd.f32 %v507, %v594
    %v596 = vpop.f32.mrf.mxu0
    %v597 = vadd.f32 %v511, %v596
    %598 = vdwg.mxu0
    %599 = vmatprep.subr.mxu0 %v299
    %600 = vmatpush1.msra.mxu0 %v298
    %601 = vmatprep.subr.mxu0 %v295
    %602 = vmatpush1.msra.mxu0 %v294
    %603 = vmatprep.subr.mxu0 %v291
    %604 = vmatpush1.msra.mxu0 %v290
    %605 = vmatprep.subr.mxu0 %v287
    %606 = vmatpush1.msra.mxu0 %v286
    %607 = vmatprep.subr.mxu0 %v283
    %608 = vmatpush1.msra.mxu0 %v282
    %609 = vmatprep.subr.mxu0 %v279
    %610 = vmatpush1.msra.mxu0 %v278
    %611 = vmatprep.subr.mxu0 %v275
    %612 = vmatpush1.msra.mxu0 %v274
    %613 = vmatprep.subr.mxu0 %v271
    %614 = vmatpush1.msra.mxu0 %v270
    %615 = vmatprep.subr.mxu0 %v267
    %616 = vmatpush1.msra.mxu0 %v266
    %617 = vmatprep.subr.mxu0 %v263
    %618 = vmatpush1.msra.mxu0 %v262
    %619 = vmatprep.subr.mxu0 %v259
    %620 = vmatpush1.msra.mxu0 %v258
    %621 = vmatprep.subr.mxu0 %v255
    %622 = vmatpush1.msra.mxu0 %v254
    %623 = vmatprep.subr.mxu0 %v251
    %624 = vmatpush1.msra.mxu0 %v250
    %625 = vmatprep.subr.mxu0 %v247
    %626 = vmatpush1.msra.mxu0 %v246
    %627 = vmatprep.subr.mxu0 %v243
    %628 = vmatpush1.msra.mxu0 %v242
    %629 = vmatprep.subr.mxu0 %v239
    %630 = vmatpush1.msra.mxu0 %v238
    %631 = vmatprep.subr.mxu0 %v363
    %632 = vmatpush2.msra.mxu0 %v362
    %633 = vmatprep.subr.mxu0 %v359
    %634 = vmatpush2.msra.mxu0 %v358
    %635 = vmatprep.subr.mxu0 %v355
    %636 = vmatpush2.msra.mxu0 %v354
    %637 = vmatprep.subr.mxu0 %v351
    %638 = vmatpush2.msra.mxu0 %v350
    %639 = vmatprep.subr.mxu0 %v347
    %640 = vmatpush2.msra.mxu0 %v346
    %641 = vmatprep.subr.mxu0 %v343
    %642 = vmatpush2.msra.mxu0 %v342
    %643 = vmatprep.subr.mxu0 %v339
    %644 = vmatpush2.msra.mxu0 %v338
    %645 = vmatprep.subr.mxu0 %v335
    %646 = vmatpush2.msra.mxu0 %v334
    %647 = vmatprep.subr.mxu0 %v331
    %648 = vmatpush2.msra.mxu0 %v330
    %649 = vmatprep.subr.mxu0 %v327
    %650 = vmatpush2.msra.mxu0 %v326
    %651 = vmatprep.subr.mxu0 %v323
    %652 = vmatpush2.msra.mxu0 %v322
    %653 = vmatprep.subr.mxu0 %v319
    %654 = vmatpush2.msra.mxu0 %v318
    %655 = vmatprep.subr.mxu0 %v315
    %656 = vmatpush2.msra.mxu0 %v314
    %657 = vmatprep.subr.mxu0 %v311
    %658 = vmatpush2.msra.mxu0 %v310
    %659 = vmatprep.subr.mxu0 %v307
    %660 = vmatpush2.msra.mxu0 %v306
    %661 = vmatprep.subr.mxu0 %v303
    %662 = vmatpush2.msra.mxu0 %v302
    %663 = vmatprep.mubr.f32.mxu0 %v106
    %664 = vmatmul.mubr.f32.gmra.mxu0 %v105
    %v665 = vpop.f32.mrf.mxu0
    %v666 = vadd.f32 %v595, %v665
    %v667 = vpop.f32.mrf.mxu0
    %v668 = vadd.f32 %v597, %v667
    %669 = vdwg.mxu0
    %670 = vmatprep.subr.mxu0 %v427
    %671 = vmatpush1.msra.mxu0 %v426
    %672 = vmatprep.subr.mxu0 %v423
    %673 = vmatpush1.msra.mxu0 %v422
    %674 = vmatprep.subr.mxu0 %v419
    %675 = vmatpush1.msra.mxu0 %v418
    %676 = vmatprep.subr.mxu0 %v415
    %677 = vmatpush1.msra.mxu0 %v414
    %678 = vmatprep.subr.mxu0 %v411
    %679 = vmatpush1.msra.mxu0 %v410
    %680 = vmatprep.subr.mxu0 %v407
    %681 = vmatpush1.msra.mxu0 %v406
    %682 = vmatprep.subr.mxu0 %v403
    %683 = vmatpush1.msra.mxu0 %v402
    %684 = vmatprep.subr.mxu0 %v399
    %685 = vmatpush1.msra.mxu0 %v398
    %686 = vmatprep.subr.mxu0 %v395
    %687 = vmatpush1.msra.mxu0 %v394
    %688 = vmatprep.subr.mxu0 %v391
    %689 = vmatpush1.msra.mxu0 %v390
    %690 = vmatprep.subr.mxu0 %v387
    %691 = vmatpush1.msra.mxu0 %v386
    %692 = vmatprep.subr.mxu0 %v383
    %693 = vmatpush1.msra.mxu0 %v382
    %694 = vmatprep.subr.mxu0 %v379
    %695 = vmatpush1.msra.mxu0 %v378
    %696 = vmatprep.subr.mxu0 %v375
    %697 = vmatpush1.msra.mxu0 %v374
    %698 = vmatprep.subr.mxu0 %v371
    %699 = vmatpush1.msra.mxu0 %v370
    %700 = vmatprep.subr.mxu0 %v367
    %701 = vmatpush1.msra.mxu0 %v366
    %702 = vmatprep.subr.mxu0 %v491
    %703 = vmatpush2.msra.mxu0 %v490
    %704 = vmatprep.subr.mxu0 %v487
    %705 = vmatpush2.msra.mxu0 %v486
    %706 = vmatprep.subr.mxu0 %v483
    %707 = vmatpush2.msra.mxu0 %v482
    %708 = vmatprep.subr.mxu0 %v479
    %709 = vmatpush2.msra.mxu0 %v478
    %710 = vmatprep.subr.mxu0 %v475
    %711 = vmatpush2.msra.mxu0 %v474
    %712 = vmatprep.subr.mxu0 %v471
    %713 = vmatpush2.msra.mxu0 %v470
    %714 = vmatprep.subr.mxu0 %v467
    %715 = vmatpush2.msra.mxu0 %v466
    %716 = vmatprep.subr.mxu0 %v463
    %717 = vmatpush2.msra.mxu0 %v462
    %718 = vmatprep.subr.mxu0 %v459
    %719 = vmatpush2.msra.mxu0 %v458
    %720 = vmatprep.subr.mxu0 %v455
    %721 = vmatpush2.msra.mxu0 %v454
    %722 = vmatprep.subr.mxu0 %v451
    %723 = vmatpush2.msra.mxu0 %v450
    %724 = vmatprep.subr.mxu0 %v447
    %725 = vmatpush2.msra.mxu0 %v446
    %726 = vmatprep.subr.mxu0 %v443
    %727 = vmatpush2.msra.mxu0 %v442
    %728 = vmatprep.subr.mxu0 %v439
    %729 = vmatpush2.msra.mxu0 %v438
    %730 = vmatprep.subr.mxu0 %v435
    %731 = vmatpush2.msra.mxu0 %v434
    %732 = vmatprep.subr.mxu0 %v431
    %733 = vmatpush2.msra.mxu0 %v430
    %734 = vmatprep.mubr.f32.mxu0 %v108
    %735 = vmatmul.mubr.f32.gmra.mxu0 %v107
    %v736 = vpop.f32.mrf.mxu0
    %v737 = vadd.f32 %v666, %v736
    %v738 = vpop.f32.mrf.mxu0
    %v739 = vadd.f32 %v668, %v738
    %740 = vdwg.mxu0
    %741 = vmatprep.subr.mxu0 0.0
    %742 = vmatpush1.msra.mxu0 0.0
    %743 = vmatprep.subr.mxu0 0.0
    %744 = vmatpush1.msra.mxu0 0.0
    %745 = vmatprep.subr.mxu0 0.0
    %746 = vmatpush1.msra.mxu0 0.0
    %747 = vmatprep.subr.mxu0 0.0
    %748 = vmatpush1.msra.mxu0 0.0
    %749 = vmatprep.subr.mxu0 0.0
    %750 = vmatpush1.msra.mxu0 0.0
    %751 = vmatprep.subr.mxu0 0.0
    %752 = vmatpush1.msra.mxu0 0.0
    %753 = vmatprep.subr.mxu0 0.0
    %754 = vmatpush1.msra.mxu0 0.0
    %755 = vmatprep.subr.mxu0 0.0
    %756 = vmatpush1.msra.mxu0 0.0
    %757 = vmatprep.subr.mxu0 0.0
    %758 = vmatpush1.msra.mxu0 0.0
    %759 = vmatprep.subr.mxu0 0.0
    %760 = vmatpush1.msra.mxu0 0.0
    %761 = vmatprep.subr.mxu0 0.0
    %762 = vmatpush1.msra.mxu0 0.0
    %763 = vmatprep.subr.mxu0 0.0
    %764 = vmatpush1.msra.mxu0 0.0
    %765 = vmatprep.subr.mxu0 0.0
    %766 = vmatpush1.msra.mxu0 0.0
    %767 = vmatprep.subr.mxu0 0.0
    %768 = vmatpush1.msra.mxu0 0.0
    %769 = vmatprep.subr.mxu0 %v499
    %770 = vmatpush1.msra.mxu0 %v498
    %771 = vmatprep.subr.mxu0 %v495
    %772 = vmatpush1.msra.mxu0 %v494
    %773 = vmatprep.subr.mxu0 0.0
    %774 = vmatpush2.msra.mxu0 0.0
    %775 = vmatprep.subr.mxu0 0.0
    %776 = vmatpush2.msra.mxu0 0.0
    %777 = vmatprep.subr.mxu0 0.0
    %778 = vmatpush2.msra.mxu0 0.0
    %779 = vmatprep.subr.mxu0 0.0
    %780 = vmatpush2.msra.mxu0 0.0
    %781 = vmatprep.subr.mxu0 0.0
    %782 = vmatpush2.msra.mxu0 0.0
    %783 = vmatprep.subr.mxu0 0.0
    %784 = vmatpush2.msra.mxu0 0.0
    %785 = vmatprep.subr.mxu0 0.0
    %786 = vmatpush2.msra.mxu0 0.0
    %787 = vmatprep.subr.mxu0 0.0
    %788 = vmatpush2.msra.mxu0 0.0
    %789 = vmatprep.subr.mxu0 0.0
    %790 = vmatpush2.msra.mxu0 0.0
    %791 = vmatprep.subr.mxu0 0.0
    %792 = vmatpush2.msra.mxu0 0.0
    %793 = vmatprep.subr.mxu0 0.0
    %794 = vmatpush2.msra.mxu0 0.0
    %795 = vmatprep.subr.mxu0 0.0
    %796 = vmatpush2.msra.mxu0 0.0
    %797 = vmatprep.subr.mxu0 0.0
    %798 = vmatpush2.msra.mxu0 0.0
    %799 = vmatprep.subr.mxu0 0.0
    %800 = vmatpush2.msra.mxu0 0.0
    %801 = vmatprep.subr.mxu0 0.0
    %802 = vmatpush2.msra.mxu0 0.0
    %803 = vmatprep.subr.mxu0 0.0
    %804 = vmatpush2.msra.mxu0 0.0
    %805 = vmatprep.mubr.f32.mxu0 0.0
    %806 = vmatmul.mubr.f32.gmra.mxu0 %v526
    %v807 = vpop.f32.mrf.mxu0
    %v808 = vadd.f32 %v737, %v807
    %v809 = vpop.f32.mrf.mxu0
    %v810 = vadd.f32 %v739, %v809
    %811 = vdwg.mxu0
    %812 = vmatprep.subr.mxu0 %v173
    %813 = vmatpush1.msra.mxu0 %v172
    %814 = vmatprep.subr.mxu0 %v169
    %815 = vmatpush1.msra.mxu0 %v168
    %816 = vmatprep.subr.mxu0 %v165
    %817 = vmatpush1.msra.mxu0 %v164
    %818 = vmatprep.subr.mxu0 %v161
    %819 = vmatpush1.msra.mxu0 %v160
    %820 = vmatprep.subr.mxu0 %v157
    %821 = vmatpush1.msra.mxu0 %v156
    %822 = vmatprep.subr.mxu0 %v153
    %823 = vmatpush1.msra.mxu0 %v152
    %824 = vmatprep.subr.mxu0 %v149
    %825 = vmatpush1.msra.mxu0 %v148
    %826 = vmatprep.subr.mxu0 %v145
    %827 = vmatpush1.msra.mxu0 %v144
    %828 = vmatprep.subr.mxu0 %v141
    %829 = vmatpush1.msra.mxu0 %v140
    %830 = vmatprep.subr.mxu0 %v137
    %831 = vmatpush1.msra.mxu0 %v136
    %832 = vmatprep.subr.mxu0 %v133
    %833 = vmatpush1.msra.mxu0 %v132
    %834 = vmatprep.subr.mxu0 %v129
    %835 = vmatpush1.msra.mxu0 %v128
    %836 = vmatprep.subr.mxu0 %v125
    %837 = vmatpush1.msra.mxu0 %v124
    %838 = vmatprep.subr.mxu0 %v121
    %839 = vmatpush1.msra.mxu0 %v120
    %840 = vmatprep.subr.mxu0 %v117
    %841 = vmatpush1.msra.mxu0 %v116
    %842 = vmatprep.subr.mxu0 %v113
    %843 = vmatpush1.msra.mxu0 %v112
    %844 = vmatprep.subr.mxu0 %v237
    %845 = vmatpush2.msra.mxu0 %v236
    %846 = vmatprep.subr.mxu0 %v233
    %847 = vmatpush2.msra.mxu0 %v232
    %848 = vmatprep.subr.mxu0 %v229
    %849 = vmatpush2.msra.mxu0 %v228
    %850 = vmatprep.subr.mxu0 %v225
    %851 = vmatpush2.msra.mxu0 %v224
    %852 = vmatprep.subr.mxu0 %v221
    %853 = vmatpush2.msra.mxu0 %v220
    %854 = vmatprep.subr.mxu0 %v217
    %855 = vmatpush2.msra.mxu0 %v216
    %856 = vmatprep.subr.mxu0 %v213
    %857 = vmatpush2.msra.mxu0 %v212
    %858 = vmatprep.subr.mxu0 %v209
    %859 = vmatpush2.msra.mxu0 %v208
    %860 = vmatprep.subr.mxu0 %v205
    %861 = vmatpush2.msra.mxu0 %v204
    %862 = vmatprep.subr.mxu0 %v201
    %863 = vmatpush2.msra.mxu0 %v200
    %864 = vmatprep.subr.mxu0 %v197
    %865 = vmatpush2.msra.mxu0 %v196
    %866 = vmatprep.subr.mxu0 %v193
    %867 = vmatpush2.msra.mxu0 %v192
    %868 = vmatprep.subr.mxu0 %v189
    %869 = vmatpush2.msra.mxu0 %v188
    %870 = vmatprep.subr.mxu0 %v185
    %871 = vmatpush2.msra.mxu0 %v184
    %872 = vmatprep.subr.mxu0 %v181
    %873 = vmatpush2.msra.mxu0 %v180
    %874 = vmatprep.subr.mxu0 %v177
    %875 = vmatpush2.msra.mxu0 %v176
    %876 = vmatprep.mubr.f32.mxu0 %v104
    %877 = vmatmul.mubr.f32.gmra.mxu0 %v103
    %v878 = vpop.f32.mrf.mxu0
    %v879 = vadd.f32 %v515, %v878
    %v880 = vpop.f32.mrf.mxu0
    %v881 = vadd.f32 %v519, %v880
    %882 = vdwg.mxu0
    %883 = vmatprep.subr.mxu0 %v301
    %884 = vmatpush1.msra.mxu0 %v300
    %885 = vmatprep.subr.mxu0 %v297
    %886 = vmatpush1.msra.mxu0 %v296
    %887 = vmatprep.subr.mxu0 %v293
    %888 = vmatpush1.msra.mxu0 %v292
    %889 = vmatprep.subr.mxu0 %v289
    %890 = vmatpush1.msra.mxu0 %v288
    %891 = vmatprep.subr.mxu0 %v285
    %892 = vmatpush1.msra.mxu0 %v284
    %893 = vmatprep.subr.mxu0 %v281
    %894 = vmatpush1.msra.mxu0 %v280
    %895 = vmatprep.subr.mxu0 %v277
    %896 = vmatpush1.msra.mxu0 %v276
    %897 = vmatprep.subr.mxu0 %v273
    %898 = vmatpush1.msra.mxu0 %v272
    %899 = vmatprep.subr.mxu0 %v269
    %900 = vmatpush1.msra.mxu0 %v268
    %901 = vmatprep.subr.mxu0 %v265
    %902 = vmatpush1.msra.mxu0 %v264
    %903 = vmatprep.subr.mxu0 %v261
    %904 = vmatpush1.msra.mxu0 %v260
    %905 = vmatprep.subr.mxu0 %v257
    %906 = vmatpush1.msra.mxu0 %v256
    %907 = vmatprep.subr.mxu0 %v253
    %908 = vmatpush1.msra.mxu0 %v252
    %909 = vmatprep.subr.mxu0 %v249
    %910 = vmatpush1.msra.mxu0 %v248
    %911 = vmatprep.subr.mxu0 %v245
    %912 = vmatpush1.msra.mxu0 %v244
    %913 = vmatprep.subr.mxu0 %v241
    %914 = vmatpush1.msra.mxu0 %v240
    %915 = vmatprep.subr.mxu0 %v365
    %916 = vmatpush2.msra.mxu0 %v364
    %917 = vmatprep.subr.mxu0 %v361
    %918 = vmatpush2.msra.mxu0 %v360
    %919 = vmatprep.subr.mxu0 %v357
    %920 = vmatpush2.msra.mxu0 %v356
    %921 = vmatprep.subr.mxu0 %v353
    %922 = vmatpush2.msra.mxu0 %v352
    %923 = vmatprep.subr.mxu0 %v349
    %924 = vmatpush2.msra.mxu0 %v348
    %925 = vmatprep.subr.mxu0 %v345
    %926 = vmatpush2.msra.mxu0 %v344
    %927 = vmatprep.subr.mxu0 %v341
    %928 = vmatpush2.msra.mxu0 %v340
    %929 = vmatprep.subr.mxu0 %v337
    %930 = vmatpush2.msra.mxu0 %v336
    %931 = vmatprep.subr.mxu0 %v333
    %932 = vmatpush2.msra.mxu0 %v332
    %933 = vmatprep.subr.mxu0 %v329
    %934 = vmatpush2.msra.mxu0 %v328
    %935 = vmatprep.subr.mxu0 %v325
    %936 = vmatpush2.msra.mxu0 %v324
    %937 = vmatprep.subr.mxu0 %v321
    %938 = vmatpush2.msra.mxu0 %v320
    %939 = vmatprep.subr.mxu0 %v317
    %940 = vmatpush2.msra.mxu0 %v316
    %941 = vmatprep.subr.mxu0 %v313
    %942 = vmatpush2.msra.mxu0 %v312
    %943 = vmatprep.subr.mxu0 %v309
    %944 = vmatpush2.msra.mxu0 %v308
    %945 = vmatprep.subr.mxu0 %v305
    %946 = vmatpush2.msra.mxu0 %v304
    %947 = vmatprep.mubr.f32.mxu0 %v106
    %948 = vmatmul.mubr.f32.gmra.mxu0 %v105
    %v949 = vpop.f32.mrf.mxu0
    %v950 = vadd.f32 %v879, %v949
    %v951 = vpop.f32.mrf.mxu0
    %v952 = vadd.f32 %v881, %v951
    %953 = vdwg.mxu0
    %954 = vmatprep.subr.mxu0 %v429
    %955 = vmatpush1.msra.mxu0 %v428
    %956 = vmatprep.subr.mxu0 %v425
    %957 = vmatpush1.msra.mxu0 %v424
    %958 = vmatprep.subr.mxu0 %v421
    %959 = vmatpush1.msra.mxu0 %v420
    %960 = vmatprep.subr.mxu0 %v417
    %961 = vmatpush1.msra.mxu0 %v416
    %962 = vmatprep.subr.mxu0 %v413
    %963 = vmatpush1.msra.mxu0 %v412
    %964 = vmatprep.subr.mxu0 %v409
    %965 = vmatpush1.msra.mxu0 %v408
    %966 = vmatprep.subr.mxu0 %v405
    %967 = vmatpush1.msra.mxu0 %v404
    %968 = vmatprep.subr.mxu0 %v401
    %969 = vmatpush1.msra.mxu0 %v400
    %970 = vmatprep.subr.mxu0 %v397
    %971 = vmatpush1.msra.mxu0 %v396
    %972 = vmatprep.subr.mxu0 %v393
    %973 = vmatpush1.msra.mxu0 %v392
    %974 = vmatprep.subr.mxu0 %v389
    %975 = vmatpush1.msra.mxu0 %v388
    %976 = vmatprep.subr.mxu0 %v385
    %977 = vmatpush1.msra.mxu0 %v384
    %978 = vmatprep.subr.mxu0 %v381
    %979 = vmatpush1.msra.mxu0 %v380
    %980 = vmatprep.subr.mxu0 %v377
    %981 = vmatpush1.msra.mxu0 %v376
    %982 = vmatprep.subr.mxu0 %v373
    %983 = vmatpush1.msra.mxu0 %v372
    %984 = vmatprep.subr.mxu0 %v369
    %985 = vmatpush1.msra.mxu0 %v368
    %986 = vmatprep.subr.mxu0 %v493
    %987 = vmatpush2.msra.mxu0 %v492
    %988 = vmatprep.subr.mxu0 %v489
    %989 = vmatpush2.msra.mxu0 %v488
    %990 = vmatprep.subr.mxu0 %v485
    %991 = vmatpush2.msra.mxu0 %v484
    %992 = vmatprep.subr.mxu0 %v481
    %993 = vmatpush2.msra.mxu0 %v480
    %994 = vmatprep.subr.mxu0 %v477
    %995 = vmatpush2.msra.mxu0 %v476
    %996 = vmatprep.subr.mxu0 %v473
    %997 = vmatpush2.msra.mxu0 %v472
    %998 = vmatprep.subr.mxu0 %v469
    %999 = vmatpush2.msra.mxu0 %v468
    %1000 = vmatprep.subr.mxu0 %v465
    %1001 = vmatpush2.msra.mxu0 %v464
    %1002 = vmatprep.subr.mxu0 %v461
    %1003 = vmatpush2.msra.mxu0 %v460
    %1004 = vmatprep.subr.mxu0 %v457
    %1005 = vmatpush2.msra.mxu0 %v456
    %1006 = vmatprep.subr.mxu0 %v453
    %1007 = vmatpush2.msra.mxu0 %v452
    %1008 = vmatprep.subr.mxu0 %v449
    %1009 = vmatpush2.msra.mxu0 %v448
    %1010 = vmatprep.subr.mxu0 %v445
    %1011 = vmatpush2.msra.mxu0 %v444
    %1012 = vmatprep.subr.mxu0 %v441
    %1013 = vmatpush2.msra.mxu0 %v440
    %1014 = vmatprep.subr.mxu0 %v437
    %1015 = vmatpush2.msra.mxu0 %v436
    %1016 = vmatprep.subr.mxu0 %v433
    %1017 = vmatpush2.msra.mxu0 %v432
    %1018 = vmatprep.mubr.f32.mxu0 %v108
    %1019 = vmatmul.mubr.f32.gmra.mxu0 %v107
    %v1020 = vpop.f32.mrf.mxu0
    %v1021 = vadd.f32 %v950, %v1020
    %v1022 = vpop.f32.mrf.mxu0
    %v1023 = vadd.f32 %v952, %v1022
    %1024 = vdwg.mxu0
    %1025 = vmatprep.subr.mxu0 0.0
    %1026 = vmatpush1.msra.mxu0 0.0
    %1027 = vmatprep.subr.mxu0 0.0
    %1028 = vmatpush1.msra.mxu0 0.0
    %1029 = vmatprep.subr.mxu0 0.0
    %1030 = vmatpush1.msra.mxu0 0.0
    %1031 = vmatprep.subr.mxu0 0.0
    %1032 = vmatpush1.msra.mxu0 0.0
    %1033 = vmatprep.subr.mxu0 0.0
    %1034 = vmatpush1.msra.mxu0 0.0
    %1035 = vmatprep.subr.mxu0 0.0
    %1036 = vmatpush1.msra.mxu0 0.0
    %1037 = vmatprep.subr.mxu0 0.0
    %1038 = vmatpush1.msra.mxu0 0.0
    %1039 = vmatprep.subr.mxu0 0.0
    %1040 = vmatpush1.msra.mxu0 0.0
    %1041 = vmatprep.subr.mxu0 0.0
    %1042 = vmatpush1.msra.mxu0 0.0
    %1043 = vmatprep.subr.mxu0 0.0
    %1044 = vmatpush1.msra.mxu0 0.0
    %1045 = vmatprep.subr.mxu0 0.0
    %1046 = vmatpush1.msra.mxu0 0.0
    %1047 = vmatprep.subr.mxu0 0.0
    %1048 = vmatpush1.msra.mxu0 0.0
    %1049 = vmatprep.subr.mxu0 0.0
    %1050 = vmatpush1.msra.mxu0 0.0
    %1051 = vmatprep.subr.mxu0 0.0
    %1052 = vmatpush1.msra.mxu0 0.0
    %1053 = vmatprep.subr.mxu0 %v501
    %1054 = vmatpush1.msra.mxu0 %v500
    %1055 = vmatprep.subr.mxu0 %v497
    %1056 = vmatpush1.msra.mxu0 %v496
    %1057 = vmatprep.subr.mxu0 0.0
    %1058 = vmatpush2.msra.mxu0 0.0
    %1059 = vmatprep.subr.mxu0 0.0
    %1060 = vmatpush2.msra.mxu0 0.0
    %1061 = vmatprep.subr.mxu0 0.0
    %1062 = vmatpush2.msra.mxu0 0.0
    %1063 = vmatprep.subr.mxu0 0.0
    %1064 = vmatpush2.msra.mxu0 0.0
    %1065 = vmatprep.subr.mxu0 0.0
    %1066 = vmatpush2.msra.mxu0 0.0
    %1067 = vmatprep.subr.mxu0 0.0
    %1068 = vmatpush2.msra.mxu0 0.0
    %1069 = vmatprep.subr.mxu0 0.0
    %1070 = vmatpush2.msra.mxu0 0.0
    %1071 = vmatprep.subr.mxu0 0.0
    %1072 = vmatpush2.msra.mxu0 0.0
    %1073 = vmatprep.subr.mxu0 0.0
    %1074 = vmatpush2.msra.mxu0 0.0
    %1075 = vmatprep.subr.mxu0 0.0
    %1076 = vmatpush2.msra.mxu0 0.0
    %1077 = vmatprep.subr.mxu0 0.0
    %1078 = vmatpush2.msra.mxu0 0.0
    %1079 = vmatprep.subr.mxu0 0.0
    %1080 = vmatpush2.msra.mxu0 0.0
    %1081 = vmatprep.subr.mxu0 0.0
    %1082 = vmatpush2.msra.mxu0 0.0
    %1083 = vmatprep.subr.mxu0 0.0
    %1084 = vmatpush2.msra.mxu0 0.0
    %1085 = vmatprep.subr.mxu0 0.0
    %1086 = vmatpush2.msra.mxu0 0.0
    %1087 = vmatprep.subr.mxu0 0.0
    %1088 = vmatpush2.msra.mxu0 0.0
    %1089 = vmatprep.mubr.f32.mxu0 0.0
    %1090 = vmatmul.mubr.f32.gmra.mxu0 %v526
    %v1091 = vpop.f32.mrf.mxu0
    %v1092 = vadd.f32 %v1021, %v1091
    %v1093 = vpop.f32.mrf.mxu0
    %v1094 = vadd.f32 %v1023, %v1093
    %1095 = vdwg.mxu0
    %v1096 = vmax.f32 %v808, 0.0
    %v1097 = vmax.f32 %v810, 0.0
    %v1098 = vmax.f32 %v1092, 0.0
    %v1099 = vmax.f32 %v1094, 0.0
    %v1100 = vld [vmem:[#allocation7] sm:$0xff]
    %v1101 = vld [vmem:[#allocation7 + $0x8] sm:$0xff]
    %v1102 = vld [vmem:[#allocation7 + $0x10] sm:$0xff]
    %v1103 = vld [vmem:[#allocation7 + $0x18] sm:$0xff]
    %v1104 = vld [vmem:[#allocation7 + $0x20] sm:$0xff]
    %v1105 = vld [vmem:[#allocation7 + $0x28] sm:$0xff]
    %v1106 = vld [vmem:[#allocation7 + $0x30] sm:$0xff]
    %v1107 = vld [vmem:[#allocation7 + $0x38] sm:$0xff]
    %v1108 = vld [vmem:[#allocation7 + $0x40] sm:$0xff]
    %v1109 = vld [vmem:[#allocation7 + $0x48] sm:$0xff]
    %v1110 = vld [vmem:[#allocation7 + $0x50] sm:$0xff]
    %v1111 = vld [vmem:[#allocation7 + $0x58] sm:$0xff]
    %v1112 = vld [vmem:[#allocation7 + $0x60] sm:$0xff]
    %v1113 = vld [vmem:[#allocation7 + $0x68] sm:$0xff]
    %v1114 = vld [vmem:[#allocation7 + $0x70] sm:$0xff]
    %v1115 = vld [vmem:[#allocation7 + $0x78] sm:$0xff]
    %v1116 = vld [vmem:[#allocation7 + $0x80] sm:$0xff]
    %v1117 = vld [vmem:[#allocation7 + $0x88] sm:$0xff]
    %v1118 = vld [vmem:[#allocation7 + $0x90] sm:$0xff]
    %v1119 = vld [vmem:[#allocation7 + $0x98] sm:$0xff]
    %v1120 = vld [vmem:[#allocation7 + $0xa0] sm:$0xff]
    %v1121 = vld [vmem:[#allocation7 + $0xa8] sm:$0xff]
    %v1122 = vld [vmem:[#allocation7 + $0xb0] sm:$0xff]
    %v1123 = vld [vmem:[#allocation7 + $0xb8] sm:$0xff]
    %v1124 = vld [vmem:[#allocation7 + $0xc0] sm:$0xff]
    %v1125 = vld [vmem:[#allocation7 + $0xc8] sm:$0xff]
    %v1126 = vld [vmem:[#allocation7 + $0xd0] sm:$0xff]
    %v1127 = vld [vmem:[#allocation7 + $0xd8] sm:$0xff]
    %v1128 = vld [vmem:[#allocation7 + $0xe0] sm:$0xff]
    %v1129 = vld [vmem:[#allocation7 + $0xe8] sm:$0xff]
    %v1130 = vld [vmem:[#allocation7 + $0xf0] sm:$0xff]
    %v1131 = vld [vmem:[#allocation7 + $0xf8] sm:$0xff]
    %v1132 = vld [vmem:[#allocation7 + $0x100] sm:$0xff]
    %v1133 = vld [vmem:[#allocation7 + $0x108] sm:$0xff]
    %v1134 = vld [vmem:[#allocation7 + $0x110] sm:$0xff]
    %v1135 = vld [vmem:[#allocation7 + $0x118] sm:$0xff]
    %v1136 = vld [vmem:[#allocation7 + $0x120] sm:$0xff]
    %v1137 = vld [vmem:[#allocation7 + $0x128] sm:$0xff]
    %v1138 = vld [vmem:[#allocation7 + $0x130] sm:$0xff]
    %v1139 = vld [vmem:[#allocation7 + $0x138] sm:$0xff]
    %v1140 = vld [vmem:[#allocation7 + $0x140] sm:$0xff]
    %v1141 = vld [vmem:[#allocation7 + $0x148] sm:$0xff]
    %v1142 = vld [vmem:[#allocation7 + $0x150] sm:$0xff]
    %v1143 = vld [vmem:[#allocation7 + $0x158] sm:$0xff]
    %v1144 = vld [vmem:[#allocation7 + $0x160] sm:$0xff]
    %v1145 = vld [vmem:[#allocation7 + $0x168] sm:$0xff]
    %v1146 = vld [vmem:[#allocation7 + $0x170] sm:$0xff]
    %v1147 = vld [vmem:[#allocation7 + $0x178] sm:$0xff]
    %v1148 = vld [vmem:[#allocation7 + $0x180] sm:$0xff]
    %v1149 = vld [vmem:[#allocation7 + $0x188] sm:$0xff]
    %v1150 = vld [vmem:[#allocation7 + $0x190] sm:$0xff]
    %v1151 = vld [vmem:[#allocation7 + $0x198] sm:$0xff]
    %v1152 = vld [vmem:[#allocation7 + $0x1a0] sm:$0xff]
    %v1153 = vld [vmem:[#allocation7 + $0x1a8] sm:$0xff]
    %v1154 = vld [vmem:[#allocation7 + $0x1b0] sm:$0xff]
    %v1155 = vld [vmem:[#allocation7 + $0x1b8] sm:$0xff]
    %v1156 = vld [vmem:[#allocation7 + $0x1c0] sm:$0xff]
    %v1157 = vld [vmem:[#allocation7 + $0x1c8] sm:$0xff]
    %v1158 = vld [vmem:[#allocation7 + $0x1d0] sm:$0xff]
    %v1159 = vld [vmem:[#allocation7 + $0x1d8] sm:$0xff]
    %v1160 = vld [vmem:[#allocation7 + $0x1e0] sm:$0xff]
    %v1161 = vld [vmem:[#allocation7 + $0x1e8] sm:$0xff]
    %v1162 = vld [vmem:[#allocation7 + $0x1f0] sm:$0xff]
    %v1163 = vld [vmem:[#allocation7 + $0x1f8] sm:$0xff]
    %v1164 = vld [vmem:[#allocation7 + $0x200] sm:$0xff]
    %v1165 = vld [vmem:[#allocation7 + $0x208] sm:$0xff]
    %v1166 = vld [vmem:[#allocation7 + $0x210] sm:$0xff]
    %v1167 = vld [vmem:[#allocation7 + $0x218] sm:$0xff]
    %v1168 = vld [vmem:[#allocation7 + $0x220] sm:$0xff]
    %v1169 = vld [vmem:[#allocation7 + $0x228] sm:$0xff]
    %v1170 = vld [vmem:[#allocation7 + $0x230] sm:$0xff]
    %v1171 = vld [vmem:[#allocation7 + $0x238] sm:$0xff]
    %v1172 = vld [vmem:[#allocation7 + $0x240] sm:$0xff]
    %v1173 = vld [vmem:[#allocation7 + $0x248] sm:$0xff]
    %v1174 = vld [vmem:[#allocation7 + $0x250] sm:$0xff]
    %v1175 = vld [vmem:[#allocation7 + $0x258] sm:$0xff]
    %v1176 = vld [vmem:[#allocation7 + $0x260] sm:$0xff]
    %v1177 = vld [vmem:[#allocation7 + $0x268] sm:$0xff]
    %v1178 = vld [vmem:[#allocation7 + $0x270] sm:$0xff]
    %v1179 = vld [vmem:[#allocation7 + $0x278] sm:$0xff]
    %v1180 = vld [vmem:[#allocation7 + $0x280] sm:$0xff]
    %v1181 = vld [vmem:[#allocation7 + $0x288] sm:$0xff]
    %v1182 = vld [vmem:[#allocation7 + $0x290] sm:$0xff]
    %v1183 = vld [vmem:[#allocation7 + $0x298] sm:$0xff]
    %v1184 = vld [vmem:[#allocation7 + $0x2a0] sm:$0xff]
    %v1185 = vld [vmem:[#allocation7 + $0x2a8] sm:$0xff]
    %v1186 = vld [vmem:[#allocation7 + $0x2b0] sm:$0xff]
    %v1187 = vld [vmem:[#allocation7 + $0x2b8] sm:$0xff]
    %v1188 = vld [vmem:[#allocation7 + $0x2c0] sm:$0xff]
    %v1189 = vld [vmem:[#allocation7 + $0x2c8] sm:$0xff]
    %v1190 = vld [vmem:[#allocation7 + $0x2d0] sm:$0xff]
    %v1191 = vld [vmem:[#allocation7 + $0x2d8] sm:$0xff]
    %v1192 = vld [vmem:[#allocation7 + $0x2e0] sm:$0xff]
    %v1193 = vld [vmem:[#allocation7 + $0x2e8] sm:$0xff]
    %v1194 = vld [vmem:[#allocation7 + $0x2f0] sm:$0xff]
    %v1195 = vld [vmem:[#allocation7 + $0x2f8] sm:$0xff]
    %v1196 = vld [vmem:[#allocation7 + $0x300] sm:$0xff]
    %v1197 = vld [vmem:[#allocation7 + $0x308] sm:$0xff]
    %v1198 = vld [vmem:[#allocation7 + $0x310] sm:$0xff]
    %v1199 = vld [vmem:[#allocation7 + $0x318] sm:$0xff]
    %v1200 = vld [vmem:[#allocation7 + $0x320] sm:$0xff]
    %v1201 = vld [vmem:[#allocation7 + $0x328] sm:$0xff]
    %v1202 = vld [vmem:[#allocation7 + $0x330] sm:$0xff]
    %v1203 = vld [vmem:[#allocation7 + $0x338] sm:$0xff]
    %v1204 = vld [vmem:[#allocation7 + $0x340] sm:$0xff]
    %v1205 = vld [vmem:[#allocation7 + $0x348] sm:$0xff]
    %v1206 = vld [vmem:[#allocation7 + $0x350] sm:$0xff]
    %v1207 = vld [vmem:[#allocation7 + $0x358] sm:$0xff]
    %v1208 = vld [vmem:[#allocation7 + $0x360] sm:$0xff]
    %v1209 = vld [vmem:[#allocation7 + $0x368] sm:$0xff]
    %v1210 = vld [vmem:[#allocation7 + $0x370] sm:$0xff]
    %v1211 = vld [vmem:[#allocation7 + $0x378] sm:$0xff]
    %v1212 = vld [vmem:[#allocation7 + $0x380] sm:$0xff]
    %v1213 = vld [vmem:[#allocation7 + $0x388] sm:$0xff]
    %v1214 = vld [vmem:[#allocation7 + $0x390] sm:$0xff]
    %v1215 = vld [vmem:[#allocation7 + $0x398] sm:$0xff]
    %v1216 = vld [vmem:[#allocation7 + $0x3a0] sm:$0xff]
    %v1217 = vld [vmem:[#allocation7 + $0x3a8] sm:$0xff]
    %v1218 = vld [vmem:[#allocation7 + $0x3b0] sm:$0xff]
    %v1219 = vld [vmem:[#allocation7 + $0x3b8] sm:$0xff]
    %v1220 = vld [vmem:[#allocation7 + $0x3c0] sm:$0xff]
    %v1221 = vld [vmem:[#allocation7 + $0x3c8] sm:$0xff]
    %v1222 = vld [vmem:[#allocation7 + $0x3d0] sm:$0xff]
    %v1223 = vld [vmem:[#allocation7 + $0x3d8] sm:$0xff]
    %v1224 = vld [vmem:[#allocation7 + $0x3e0] sm:$0xff]
    %v1225 = vld [vmem:[#allocation7 + $0x3e8] sm:$0xff]
    %v1226 = vld [vmem:[#allocation7 + $0x3f0] sm:$0xff]
    %v1227 = vld [vmem:[#allocation7 + $0x3f8] sm:$0xff]
    %v1228 = vld [vmem:[#allocation7 + $0x400] sm:$0xff]
    %v1229 = vld [vmem:[#allocation7 + $0x408] sm:$0xff]
    %v1230 = vld [vmem:[#allocation7 + $0x410] sm:$0xff]
    %v1231 = vld [vmem:[#allocation7 + $0x418] sm:$0xff]
    %v1232 = vld [vmem:[#allocation7 + $0x420] sm:$0xff]
    %v1233 = vld [vmem:[#allocation7 + $0x428] sm:$0xff]
    %v1234 = vld [vmem:[#allocation7 + $0x430] sm:$0xff]
    %v1235 = vld [vmem:[#allocation7 + $0x438] sm:$0xff]
    %v1236 = vld [vmem:[#allocation7 + $0x440] sm:$0xff]
    %v1237 = vld [vmem:[#allocation7 + $0x448] sm:$0xff]
    %v1238 = vld [vmem:[#allocation7 + $0x450] sm:$0xff]
    %v1239 = vld [vmem:[#allocation7 + $0x458] sm:$0xff]
    %v1240 = vld [vmem:[#allocation7 + $0x460] sm:$0xff]
    %v1241 = vld [vmem:[#allocation7 + $0x468] sm:$0xff]
    %v1242 = vld [vmem:[#allocation7 + $0x470] sm:$0xff]
    %v1243 = vld [vmem:[#allocation7 + $0x478] sm:$0xff]
    %v1244 = vld [vmem:[#allocation7 + $0x480] sm:$0xff]
    %v1245 = vld [vmem:[#allocation7 + $0x488] sm:$0xff]
    %v1246 = vld [vmem:[#allocation7 + $0x490] sm:$0xff]
    %v1247 = vld [vmem:[#allocation7 + $0x498] sm:$0xff]
    %v1248 = vld [vmem:[#allocation7 + $0x4a0] sm:$0xff]
    %v1249 = vld [vmem:[#allocation7 + $0x4a8] sm:$0xff]
    %v1250 = vld [vmem:[#allocation7 + $0x4b0] sm:$0xff]
    %v1251 = vld [vmem:[#allocation7 + $0x4b8] sm:$0xff]
    %v1252 = vld [vmem:[#allocation7 + $0x4c0] sm:$0xff]
    %v1253 = vld [vmem:[#allocation7 + $0x4c8] sm:$0xff]
    %v1254 = vld [vmem:[#allocation7 + $0x4d0] sm:$0xff]
    %v1255 = vld [vmem:[#allocation7 + $0x4d8] sm:$0xff]
    %v1256 = vld [vmem:[#allocation7 + $0x4e0] sm:$0xff]
    %v1257 = vld [vmem:[#allocation7 + $0x4e8] sm:$0xff]
    %v1258 = vld [vmem:[#allocation7 + $0x4f0] sm:$0xff]
    %v1259 = vld [vmem:[#allocation7 + $0x4f8] sm:$0xff]
    %v1260 = vld [vmem:[#allocation7 + $0x500] sm:$0xff]
    %v1261 = vld [vmem:[#allocation7 + $0x508] sm:$0xff]
    %v1262 = vld [vmem:[#allocation7 + $0x510] sm:$0xff]
    %v1263 = vld [vmem:[#allocation7 + $0x518] sm:$0xff]
    %v1264 = vld [vmem:[#allocation7 + $0x520] sm:$0xff]
    %v1265 = vld [vmem:[#allocation7 + $0x528] sm:$0xff]
    %v1266 = vld [vmem:[#allocation7 + $0x530] sm:$0xff]
    %v1267 = vld [vmem:[#allocation7 + $0x538] sm:$0xff]
    %v1268 = vld [vmem:[#allocation7 + $0x540] sm:$0xff]
    %v1269 = vld [vmem:[#allocation7 + $0x548] sm:$0xff]
    %v1270 = vld [vmem:[#allocation7 + $0x550] sm:$0xff]
    %v1271 = vld [vmem:[#allocation7 + $0x558] sm:$0xff]
    %v1272 = vld [vmem:[#allocation7 + $0x560] sm:$0xff]
    %v1273 = vld [vmem:[#allocation7 + $0x568] sm:$0xff]
    %v1274 = vld [vmem:[#allocation7 + $0x570] sm:$0xff]
    %v1275 = vld [vmem:[#allocation7 + $0x578] sm:$0xff]
    %v1276 = vld [vmem:[#allocation7 + $0x580] sm:$0xff]
    %v1277 = vld [vmem:[#allocation7 + $0x588] sm:$0xff]
    %v1278 = vld [vmem:[#allocation7 + $0x590] sm:$0xff]
    %v1279 = vld [vmem:[#allocation7 + $0x598] sm:$0xff]
    %v1280 = vld [vmem:[#allocation7 + $0x5a0] sm:$0xff]
    %v1281 = vld [vmem:[#allocation7 + $0x5a8] sm:$0xff]
    %v1282 = vld [vmem:[#allocation7 + $0x5b0] sm:$0xff]
    %v1283 = vld [vmem:[#allocation7 + $0x5b8] sm:$0xff]
    %v1284 = vld [vmem:[#allocation7 + $0x5c0] sm:$0xff]
    %v1285 = vld [vmem:[#allocation7 + $0x5c8] sm:$0xff]
    %v1286 = vld [vmem:[#allocation7 + $0x5d0] sm:$0xff]
    %v1287 = vld [vmem:[#allocation7 + $0x5d8] sm:$0xff]
    %v1288 = vld [vmem:[#allocation7 + $0x5e0] sm:$0xff]
    %v1289 = vld [vmem:[#allocation7 + $0x5e8] sm:$0xff]
    %v1290 = vld [vmem:[#allocation7 + $0x5f0] sm:$0xff]
    %v1291 = vld [vmem:[#allocation7 + $0x5f8] sm:$0xff]
    %v1292 = vld [vmem:[#allocation7 + $0x600] sm:$0xff]
    %v1293 = vld [vmem:[#allocation7 + $0x608] sm:$0xff]
    %v1294 = vld [vmem:[#allocation7 + $0x610] sm:$0xff]
    %v1295 = vld [vmem:[#allocation7 + $0x618] sm:$0xff]
    %v1296 = vld [vmem:[#allocation7 + $0x620] sm:$0xff]
    %v1297 = vld [vmem:[#allocation7 + $0x628] sm:$0xff]
    %v1298 = vld [vmem:[#allocation7 + $0x630] sm:$0xff]
    %v1299 = vld [vmem:[#allocation7 + $0x638] sm:$0xff]
    %v1300 = vld [vmem:[#allocation7 + $0x640] sm:$0xff]
    %v1301 = vld [vmem:[#allocation7 + $0x648] sm:$0xff]
    %v1302 = vld [vmem:[#allocation7 + $0x650] sm:$0xff]
    %v1303 = vld [vmem:[#allocation7 + $0x658] sm:$0xff]
    %v1304 = vld [vmem:[#allocation7 + $0x660] sm:$0xff]
    %v1305 = vld [vmem:[#allocation7 + $0x668] sm:$0xff]
    %v1306 = vld [vmem:[#allocation7 + $0x670] sm:$0xff]
    %v1307 = vld [vmem:[#allocation7 + $0x678] sm:$0xff]
    %v1308 = vld [vmem:[#allocation7 + $0x680] sm:$0xff]
    %v1309 = vld [vmem:[#allocation7 + $0x688] sm:$0xff]
    %v1310 = vld [vmem:[#allocation7 + $0x690] sm:$0xff]
    %v1311 = vld [vmem:[#allocation7 + $0x698] sm:$0xff]
    %v1312 = vld [vmem:[#allocation7 + $0x6a0] sm:$0xff]
    %v1313 = vld [vmem:[#allocation7 + $0x6a8] sm:$0xff]
    %v1314 = vld [vmem:[#allocation7 + $0x6b0] sm:$0xff]
    %v1315 = vld [vmem:[#allocation7 + $0x6b8] sm:$0xff]
    %v1316 = vld [vmem:[#allocation7 + $0x6c0] sm:$0xff]
    %v1317 = vld [vmem:[#allocation7 + $0x6c8] sm:$0xff]
    %v1318 = vld [vmem:[#allocation7 + $0x6d0] sm:$0xff]
    %v1319 = vld [vmem:[#allocation7 + $0x6d8] sm:$0xff]
    %v1320 = vld [vmem:[#allocation7 + $0x6e0] sm:$0xff]
    %v1321 = vld [vmem:[#allocation7 + $0x6e8] sm:$0xff]
    %v1322 = vld [vmem:[#allocation7 + $0x6f0] sm:$0xff]
    %v1323 = vld [vmem:[#allocation7 + $0x6f8] sm:$0xff]
    %v1324 = vld [vmem:[#allocation7 + $0x700] sm:$0xff]
    %v1325 = vld [vmem:[#allocation7 + $0x708] sm:$0xff]
    %v1326 = vld [vmem:[#allocation7 + $0x710] sm:$0xff]
    %v1327 = vld [vmem:[#allocation7 + $0x718] sm:$0xff]
    %v1328 = vld [vmem:[#allocation7 + $0x720] sm:$0xff]
    %v1329 = vld [vmem:[#allocation7 + $0x728] sm:$0xff]
    %v1330 = vld [vmem:[#allocation7 + $0x730] sm:$0xff]
    %v1331 = vld [vmem:[#allocation7 + $0x738] sm:$0xff]
    %v1332 = vld [vmem:[#allocation7 + $0x740] sm:$0xff]
    %v1333 = vld [vmem:[#allocation7 + $0x748] sm:$0xff]
    %v1334 = vld [vmem:[#allocation7 + $0x750] sm:$0xff]
    %v1335 = vld [vmem:[#allocation7 + $0x758] sm:$0xff]
    %v1336 = vld [vmem:[#allocation7 + $0x760] sm:$0xff]
    %v1337 = vld [vmem:[#allocation7 + $0x768] sm:$0xff]
    %v1338 = vld [vmem:[#allocation7 + $0x770] sm:$0xff]
    %v1339 = vld [vmem:[#allocation7 + $0x778] sm:$0xff]
    %v1340 = vld [vmem:[#allocation7 + $0x780] sm:$0xff]
    %v1341 = vld [vmem:[#allocation7 + $0x788] sm:$0xff]
    %v1342 = vld [vmem:[#allocation7 + $0x790] sm:$0xff]
    %v1343 = vld [vmem:[#allocation7 + $0x798] sm:$0xff]
    %v1344 = vld [vmem:[#allocation7 + $0x7a0] sm:$0xff]
    %v1345 = vld [vmem:[#allocation7 + $0x7a8] sm:$0xff]
    %v1346 = vld [vmem:[#allocation7 + $0x7b0] sm:$0xff]
    %v1347 = vld [vmem:[#allocation7 + $0x7b8] sm:$0xff]
    %v1348 = vld [vmem:[#allocation7 + $0x7c0] sm:$0xff]
    %v1349 = vld [vmem:[#allocation7 + $0x7c8] sm:$0xff]
    %v1350 = vld [vmem:[#allocation7 + $0x7d0] sm:$0xff]
    %v1351 = vld [vmem:[#allocation7 + $0x7d8] sm:$0xff]
    %v1352 = vld [vmem:[#allocation7 + $0x7e0] sm:$0xff]
    %v1353 = vld [vmem:[#allocation7 + $0x7e8] sm:$0xff]
    %v1354 = vld [vmem:[#allocation7 + $0x7f0] sm:$0xff]
    %v1355 = vld [vmem:[#allocation7 + $0x7f8] sm:$0xff]
    %v1356 = vld [vmem:[#allocation8] sm:$0xf]
    %v1358 = vlaneseq
    %v1359 = vshrl.u32 %v1358, 7
    %v1360 = vsub.s32 0, %v1359
    %v1361 = vrot.slane %v1356, %v1360
    %v1362 = vlaneseq
    %v1363 = vshrl.u32 %v1362, 7
    %v1364 = vsub.s32 1, %v1363
    %v1365 = vrot.slane %v1356, %v1364
    %v1366 = vlaneseq
    %v1367 = vshrl.u32 %v1366, 7
    %v1368 = vsub.s32 2, %v1367
    %v1369 = vrot.slane %v1356, %v1368
    %v1370 = vlaneseq
    %v1371 = vshrl.u32 %v1370, 7
    %v1372 = vsub.s32 3, %v1371
    %v1373 = vrot.slane %v1356, %v1372
    %1378 = vmatprep.subr.mxu0 %v1161
    %1379 = vmatpush1.msra.mxu0 %v1160
    %1380 = vmatprep.subr.mxu0 %v1157
    %1381 = vmatpush1.msra.mxu0 %v1156
    %1382 = vmatprep.subr.mxu0 %v1153
    %1383 = vmatpush1.msra.mxu0 %v1152
    %1384 = vmatprep.subr.mxu0 %v1149
    %1385 = vmatpush1.msra.mxu0 %v1148
    %1386 = vmatprep.subr.mxu0 %v1145
    %1387 = vmatpush1.msra.mxu0 %v1144
    %1388 = vmatprep.subr.mxu0 %v1141
    %1389 = vmatpush1.msra.mxu0 %v1140
    %1390 = vmatprep.subr.mxu0 %v1137
    %1391 = vmatpush1.msra.mxu0 %v1136
    %1392 = vmatprep.subr.mxu0 %v1133
    %1393 = vmatpush1.msra.mxu0 %v1132
    %1394 = vmatprep.subr.mxu0 %v1129
    %1395 = vmatpush1.msra.mxu0 %v1128
    %1396 = vmatprep.subr.mxu0 %v1125
    %1397 = vmatpush1.msra.mxu0 %v1124
    %1398 = vmatprep.subr.mxu0 %v1121
    %1399 = vmatpush1.msra.mxu0 %v1120
    %1400 = vmatprep.subr.mxu0 %v1117
    %1401 = vmatpush1.msra.mxu0 %v1116
    %1402 = vmatprep.subr.mxu0 %v1113
    %1403 = vmatpush1.msra.mxu0 %v1112
    %1404 = vmatprep.subr.mxu0 %v1109
    %1405 = vmatpush1.msra.mxu0 %v1108
    %1406 = vmatprep.subr.mxu0 %v1105
    %1407 = vmatpush1.msra.mxu0 %v1104
    %1408 = vmatprep.subr.mxu0 %v1101
    %1409 = vmatpush1.msra.mxu0 %v1100
    %1410 = vmatprep.subr.mxu0 %v1225
    %1411 = vmatpush2.msra.mxu0 %v1224
    %1412 = vmatprep.subr.mxu0 %v1221
    %1413 = vmatpush2.msra.mxu0 %v1220
    %1414 = vmatprep.subr.mxu0 %v1217
    %1415 = vmatpush2.msra.mxu0 %v1216
    %1416 = vmatprep.subr.mxu0 %v1213
    %1417 = vmatpush2.msra.mxu0 %v1212
    %1418 = vmatprep.subr.mxu0 %v1209
    %1419 = vmatpush2.msra.mxu0 %v1208
    %1420 = vmatprep.subr.mxu0 %v1205
    %1421 = vmatpush2.msra.mxu0 %v1204
    %1422 = vmatprep.subr.mxu0 %v1201
    %1423 = vmatpush2.msra.mxu0 %v1200
    %1424 = vmatprep.subr.mxu0 %v1197
    %1425 = vmatpush2.msra.mxu0 %v1196
    %1426 = vmatprep.subr.mxu0 %v1193
    %1427 = vmatpush2.msra.mxu0 %v1192
    %1428 = vmatprep.subr.mxu0 %v1189
    %1429 = vmatpush2.msra.mxu0 %v1188
    %1430 = vmatprep.subr.mxu0 %v1185
    %1431 = vmatpush2.msra.mxu0 %v1184
    %1432 = vmatprep.subr.mxu0 %v1181
    %1433 = vmatpush2.msra.mxu0 %v1180
    %1434 = vmatprep.subr.mxu0 %v1177
    %1435 = vmatpush2.msra.mxu0 %v1176
    %1436 = vmatprep.subr.mxu0 %v1173
    %1437 = vmatpush2.msra.mxu0 %v1172
    %1438 = vmatprep.subr.mxu0 %v1169
    %1439 = vmatpush2.msra.mxu0 %v1168
    %1440 = vmatprep.subr.mxu0 %v1165
    %1441 = vmatpush2.msra.mxu0 %v1164
    %1442 = vmatprep.mubr.f32.mxu0 %v1097
    %1443 = vmatmul.mubr.f32.gmra.mxu0 %v1096
    %v1444 = vpop.f32.mrf.mxu0
    %v1445 = vadd.f32 %v1361, %v1444
    %v1446 = vpop.f32.mrf.mxu0
    %v1447 = vadd.f32 %v1365, %v1446
    %1448 = vdwg.mxu0
    %1449 = vmatprep.subr.mxu0 %v1289
    %1450 = vmatpush1.msra.mxu0 %v1288
    %1451 = vmatprep.subr.mxu0 %v1285
    %1452 = vmatpush1.msra.mxu0 %v1284
    %1453 = vmatprep.subr.mxu0 %v1281
    %1454 = vmatpush1.msra.mxu0 %v1280
    %1455 = vmatprep.subr.mxu0 %v1277
    %1456 = vmatpush1.msra.mxu0 %v1276
    %1457 = vmatprep.subr.mxu0 %v1273
    %1458 = vmatpush1.msra.mxu0 %v1272
    %1459 = vmatprep.subr.mxu0 %v1269
    %1460 = vmatpush1.msra.mxu0 %v1268
    %1461 = vmatprep.subr.mxu0 %v1265
    %1462 = vmatpush1.msra.mxu0 %v1264
    %1463 = vmatprep.subr.mxu0 %v1261
    %1464 = vmatpush1.msra.mxu0 %v1260
    %1465 = vmatprep.subr.mxu0 %v1257
    %1466 = vmatpush1.msra.mxu0 %v1256
    %1467 = vmatprep.subr.mxu0 %v1253
    %1468 = vmatpush1.msra.mxu0 %v1252
    %1469 = vmatprep.subr.mxu0 %v1249
    %1470 = vmatpush1.msra.mxu0 %v1248
    %1471 = vmatprep.subr.mxu0 %v1245
    %1472 = vmatpush1.msra.mxu0 %v1244
    %1473 = vmatprep.subr.mxu0 %v1241
    %1474 = vmatpush1.msra.mxu0 %v1240
    %1475 = vmatprep.subr.mxu0 %v1237
    %1476 = vmatpush1.msra.mxu0 %v1236
    %1477 = vmatprep.subr.mxu0 %v1233
    %1478 = vmatpush1.msra.mxu0 %v1232
    %1479 = vmatprep.subr.mxu0 %v1229
    %1480 = vmatpush1.msra.mxu0 %v1228
    %1481 = vmatprep.subr.mxu0 %v1353
    %1482 = vmatpush2.msra.mxu0 %v1352
    %1483 = vmatprep.subr.mxu0 %v1349
    %1484 = vmatpush2.msra.mxu0 %v1348
    %1485 = vmatprep.subr.mxu0 %v1345
    %1486 = vmatpush2.msra.mxu0 %v1344
    %1487 = vmatprep.subr.mxu0 %v1341
    %1488 = vmatpush2.msra.mxu0 %v1340
    %1489 = vmatprep.subr.mxu0 %v1337
    %1490 = vmatpush2.msra.mxu0 %v1336
    %1491 = vmatprep.subr.mxu0 %v1333
    %1492 = vmatpush2.msra.mxu0 %v1332
    %1493 = vmatprep.subr.mxu0 %v1329
    %1494 = vmatpush2.msra.mxu0 %v1328
    %1495 = vmatprep.subr.mxu0 %v1325
    %1496 = vmatpush2.msra.mxu0 %v1324
    %1497 = vmatprep.subr.mxu0 %v1321
    %1498 = vmatpush2.msra.mxu0 %v1320
    %1499 = vmatprep.subr.mxu0 %v1317
    %1500 = vmatpush2.msra.mxu0 %v1316
    %1501 = vmatprep.subr.mxu0 %v1313
    %1502 = vmatpush2.msra.mxu0 %v1312
    %1503 = vmatprep.subr.mxu0 %v1309
    %1504 = vmatpush2.msra.mxu0 %v1308
    %1505 = vmatprep.subr.mxu0 %v1305
    %1506 = vmatpush2.msra.mxu0 %v1304
    %1507 = vmatprep.subr.mxu0 %v1301
    %1508 = vmatpush2.msra.mxu0 %v1300
    %1509 = vmatprep.subr.mxu0 %v1297
    %1510 = vmatpush2.msra.mxu0 %v1296
    %1511 = vmatprep.subr.mxu0 %v1293
    %1512 = vmatpush2.msra.mxu0 %v1292
    %1513 = vmatprep.mubr.f32.mxu0 %v1099
    %1514 = vmatmul.mubr.f32.gmra.mxu0 %v1098
    %v1515 = vpop.f32.mrf.mxu0
    %v1516 = vadd.f32 %v1445, %v1515
    %v1517 = vpop.f32.mrf.mxu0
    %v1518 = vadd.f32 %v1447, %v1517
    %1519 = vdwg.mxu0
    %1520 = vmatprep.subr.mxu0 %v1163
    %1521 = vmatpush1.msra.mxu0 %v1162
    %1522 = vmatprep.subr.mxu0 %v1159
    %1523 = vmatpush1.msra.mxu0 %v1158
    %1524 = vmatprep.subr.mxu0 %v1155
    %1525 = vmatpush1.msra.mxu0 %v1154
    %1526 = vmatprep.subr.mxu0 %v1151
    %1527 = vmatpush1.msra.mxu0 %v1150
    %1528 = vmatprep.subr.mxu0 %v1147
    %1529 = vmatpush1.msra.mxu0 %v1146
    %1530 = vmatprep.subr.mxu0 %v1143
    %1531 = vmatpush1.msra.mxu0 %v1142
    %1532 = vmatprep.subr.mxu0 %v1139
    %1533 = vmatpush1.msra.mxu0 %v1138
    %1534 = vmatprep.subr.mxu0 %v1135
    %1535 = vmatpush1.msra.mxu0 %v1134
    %1536 = vmatprep.subr.mxu0 %v1131
    %1537 = vmatpush1.msra.mxu0 %v1130
    %1538 = vmatprep.subr.mxu0 %v1127
    %1539 = vmatpush1.msra.mxu0 %v1126
    %1540 = vmatprep.subr.mxu0 %v1123
    %1541 = vmatpush1.msra.mxu0 %v1122
    %1542 = vmatprep.subr.mxu0 %v1119
    %1543 = vmatpush1.msra.mxu0 %v1118
    %1544 = vmatprep.subr.mxu0 %v1115
    %1545 = vmatpush1.msra.mxu0 %v1114
    %1546 = vmatprep.subr.mxu0 %v1111
    %1547 = vmatpush1.msra.mxu0 %v1110
    %1548 = vmatprep.subr.mxu0 %v1107
    %1549 = vmatpush1.msra.mxu0 %v1106
    %1550 = vmatprep.subr.mxu0 %v1103
    %1551 = vmatpush1.msra.mxu0 %v1102
    %1552 = vmatprep.subr.mxu0 %v1227
    %1553 = vmatpush2.msra.mxu0 %v1226
    %1554 = vmatprep.subr.mxu0 %v1223
    %1555 = vmatpush2.msra.mxu0 %v1222
    %1556 = vmatprep.subr.mxu0 %v1219
    %1557 = vmatpush2.msra.mxu0 %v1218
    %1558 = vmatprep.subr.mxu0 %v1215
    %1559 = vmatpush2.msra.mxu0 %v1214
    %1560 = vmatprep.subr.mxu0 %v1211
    %1561 = vmatpush2.msra.mxu0 %v1210
    %1562 = vmatprep.subr.mxu0 %v1207
    %1563 = vmatpush2.msra.mxu0 %v1206
    %1564 = vmatprep.subr.mxu0 %v1203
    %1565 = vmatpush2.msra.mxu0 %v1202
    %1566 = vmatprep.subr.mxu0 %v1199
    %1567 = vmatpush2.msra.mxu0 %v1198
    %1568 = vmatprep.subr.mxu0 %v1195
    %1569 = vmatpush2.msra.mxu0 %v1194
    %1570 = vmatprep.subr.mxu0 %v1191
    %1571 = vmatpush2.msra.mxu0 %v1190
    %1572 = vmatprep.subr.mxu0 %v1187
    %1573 = vmatpush2.msra.mxu0 %v1186
    %1574 = vmatprep.subr.mxu0 %v1183
    %1575 = vmatpush2.msra.mxu0 %v1182
    %1576 = vmatprep.subr.mxu0 %v1179
    %1577 = vmatpush2.msra.mxu0 %v1178
    %1578 = vmatprep.subr.mxu0 %v1175
    %1579 = vmatpush2.msra.mxu0 %v1174
    %1580 = vmatprep.subr.mxu0 %v1171
    %1581 = vmatpush2.msra.mxu0 %v1170
    %1582 = vmatprep.subr.mxu0 %v1167
    %1583 = vmatpush2.msra.mxu0 %v1166
    %1584 = vmatprep.mubr.f32.mxu0 %v1097
    %1585 = vmatmul.mubr.f32.gmra.mxu0 %v1096
    %v1586 = vpop.f32.mrf.mxu0
    %v1587 = vadd.f32 %v1369, %v1586
    %v1588 = vpop.f32.mrf.mxu0
    %v1589 = vadd.f32 %v1373, %v1588
    %1590 = vdwg.mxu0
    %1591 = vmatprep.subr.mxu0 %v1291
    %1592 = vmatpush1.msra.mxu0 %v1290
    %1593 = vmatprep.subr.mxu0 %v1287
    %1594 = vmatpush1.msra.mxu0 %v1286
    %1595 = vmatprep.subr.mxu0 %v1283
    %1596 = vmatpush1.msra.mxu0 %v1282
    %1597 = vmatprep.subr.mxu0 %v1279
    %1598 = vmatpush1.msra.mxu0 %v1278
    %1599 = vmatprep.subr.mxu0 %v1275
    %1600 = vmatpush1.msra.mxu0 %v1274
    %1601 = vmatprep.subr.mxu0 %v1271
    %1602 = vmatpush1.msra.mxu0 %v1270
    %1603 = vmatprep.subr.mxu0 %v1267
    %1604 = vmatpush1.msra.mxu0 %v1266
    %1605 = vmatprep.subr.mxu0 %v1263
    %1606 = vmatpush1.msra.mxu0 %v1262
    %1607 = vmatprep.subr.mxu0 %v1259
    %1608 = vmatpush1.msra.mxu0 %v1258
    %1609 = vmatprep.subr.mxu0 %v1255
    %1610 = vmatpush1.msra.mxu0 %v1254
    %1611 = vmatprep.subr.mxu0 %v1251
    %1612 = vmatpush1.msra.mxu0 %v1250
    %1613 = vmatprep.subr.mxu0 %v1247
    %1614 = vmatpush1.msra.mxu0 %v1246
    %1615 = vmatprep.subr.mxu0 %v1243
    %1616 = vmatpush1.msra.mxu0 %v1242
    %1617 = vmatprep.subr.mxu0 %v1239
    %1618 = vmatpush1.msra.mxu0 %v1238
    %1619 = vmatprep.subr.mxu0 %v1235
    %1620 = vmatpush1.msra.mxu0 %v1234
    %1621 = vmatprep.subr.mxu0 %v1231
    %1622 = vmatpush1.msra.mxu0 %v1230
    %1623 = vmatprep.subr.mxu0 %v1355
    %1624 = vmatpush2.msra.mxu0 %v1354
    %1625 = vmatprep.subr.mxu0 %v1351
    %1626 = vmatpush2.msra.mxu0 %v1350
    %1627 = vmatprep.subr.mxu0 %v1347
    %1628 = vmatpush2.msra.mxu0 %v1346
    %1629 = vmatprep.subr.mxu0 %v1343
    %1630 = vmatpush2.msra.mxu0 %v1342
    %1631 = vmatprep.subr.mxu0 %v1339
    %1632 = vmatpush2.msra.mxu0 %v1338
    %1633 = vmatprep.subr.mxu0 %v1335
    %1634 = vmatpush2.msra.mxu0 %v1334
    %1635 = vmatprep.subr.mxu0 %v1331
    %1636 = vmatpush2.msra.mxu0 %v1330
    %1637 = vmatprep.subr.mxu0 %v1327
    %1638 = vmatpush2.msra.mxu0 %v1326
    %1639 = vmatprep.subr.mxu0 %v1323
    %1640 = vmatpush2.msra.mxu0 %v1322
    %1641 = vmatprep.subr.mxu0 %v1319
    %1642 = vmatpush2.msra.mxu0 %v1318
    %1643 = vmatprep.subr.mxu0 %v1315
    %1644 = vmatpush2.msra.mxu0 %v1314
    %1645 = vmatprep.subr.mxu0 %v1311
    %1646 = vmatpush2.msra.mxu0 %v1310
    %1647 = vmatprep.subr.mxu0 %v1307
    %1648 = vmatpush2.msra.mxu0 %v1306
    %1649 = vmatprep.subr.mxu0 %v1303
    %1650 = vmatpush2.msra.mxu0 %v1302
    %1651 = vmatprep.subr.mxu0 %v1299
    %1652 = vmatpush2.msra.mxu0 %v1298
    %1653 = vmatprep.subr.mxu0 %v1295
    %1654 = vmatpush2.msra.mxu0 %v1294
    %1655 = vmatprep.mubr.f32.mxu0 %v1099
    %1656 = vmatmul.mubr.f32.gmra.mxu0 %v1098
    %v1657 = vpop.f32.mrf.mxu0
    %v1658 = vadd.f32 %v1587, %v1657
    %v1659 = vpop.f32.mrf.mxu0
    %v1660 = vadd.f32 %v1589, %v1659
    %1661 = vdwg.mxu0
    %v1662 = vmax.f32 %v1516, 0.0
    %v1663 = vmax.f32 %v1518, 0.0
    %v1664 = vmax.f32 %v1658, 0.0
    %v1665 = vmax.f32 %v1660, 0.0
    %v1666 = vld [vmem:[#allocation10] sm:$0xff]
    %v1667 = vld [vmem:[#allocation10 + $0x8] sm:$0xff]
    %v1668 = vld [vmem:[#allocation10 + $0x10] sm:$0xff]
    %v1669 = vld [vmem:[#allocation10 + $0x18] sm:$0xff]
    %v1670 = vld [vmem:[#allocation10 + $0x20] sm:$0xff]
    %v1671 = vld [vmem:[#allocation10 + $0x28] sm:$0xff]
    %v1672 = vld [vmem:[#allocation10 + $0x30] sm:$0xff]
    %v1673 = vld [vmem:[#allocation10 + $0x38] sm:$0xff]
    %v1674 = vld [vmem:[#allocation10 + $0x40] sm:$0xff]
    %v1675 = vld [vmem:[#allocation10 + $0x48] sm:$0xff]
    %v1676 = vld [vmem:[#allocation10 + $0x50] sm:$0xff]
    %v1677 = vld [vmem:[#allocation10 + $0x58] sm:$0xff]
    %v1678 = vld [vmem:[#allocation10 + $0x60] sm:$0xff]
    %v1679 = vld [vmem:[#allocation10 + $0x68] sm:$0xff]
    %v1680 = vld [vmem:[#allocation10 + $0x70] sm:$0xff]
    %v1681 = vld [vmem:[#allocation10 + $0x78] sm:$0xff]
    %v1682 = vld [vmem:[#allocation10 + $0x80] sm:$0xff]
    %v1683 = vld [vmem:[#allocation10 + $0x88] sm:$0xff]
    %v1684 = vld [vmem:[#allocation10 + $0x90] sm:$0xff]
    %v1685 = vld [vmem:[#allocation10 + $0x98] sm:$0xff]
    %v1686 = vld [vmem:[#allocation10 + $0xa0] sm:$0xff]
    %v1687 = vld [vmem:[#allocation10 + $0xa8] sm:$0xff]
    %v1688 = vld [vmem:[#allocation10 + $0xb0] sm:$0xff]
    %v1689 = vld [vmem:[#allocation10 + $0xb8] sm:$0xff]
    %v1690 = vld [vmem:[#allocation10 + $0xc0] sm:$0xff]
    %v1691 = vld [vmem:[#allocation10 + $0xc8] sm:$0xff]
    %v1692 = vld [vmem:[#allocation10 + $0xd0] sm:$0xff]
    %v1693 = vld [vmem:[#allocation10 + $0xd8] sm:$0xff]
    %v1694 = vld [vmem:[#allocation10 + $0xe0] sm:$0xff]
    %v1695 = vld [vmem:[#allocation10 + $0xe8] sm:$0xff]
    %v1696 = vld [vmem:[#allocation10 + $0xf0] sm:$0xff]
    %v1697 = vld [vmem:[#allocation10 + $0xf8] sm:$0xff]
    %v1698 = vld [vmem:[#allocation10 + $0x100] sm:$0xff]
    %v1699 = vld [vmem:[#allocation10 + $0x108] sm:$0xff]
    %v1700 = vld [vmem:[#allocation10 + $0x110] sm:$0xff]
    %v1701 = vld [vmem:[#allocation10 + $0x118] sm:$0xff]
    %v1702 = vld [vmem:[#allocation10 + $0x120] sm:$0xff]
    %v1703 = vld [vmem:[#allocation10 + $0x128] sm:$0xff]
    %v1704 = vld [vmem:[#allocation10 + $0x130] sm:$0xff]
    %v1705 = vld [vmem:[#allocation10 + $0x138] sm:$0xff]
    %v1706 = vld [vmem:[#allocation10 + $0x140] sm:$0xff]
    %v1707 = vld [vmem:[#allocation10 + $0x148] sm:$0xff]
    %v1708 = vld [vmem:[#allocation10 + $0x150] sm:$0xff]
    %v1709 = vld [vmem:[#allocation10 + $0x158] sm:$0xff]
    %v1710 = vld [vmem:[#allocation10 + $0x160] sm:$0xff]
    %v1711 = vld [vmem:[#allocation10 + $0x168] sm:$0xff]
    %v1712 = vld [vmem:[#allocation10 + $0x170] sm:$0xff]
    %v1713 = vld [vmem:[#allocation10 + $0x178] sm:$0xff]
    %v1714 = vld [vmem:[#allocation10 + $0x180] sm:$0xff]
    %v1715 = vld [vmem:[#allocation10 + $0x188] sm:$0xff]
    %v1716 = vld [vmem:[#allocation10 + $0x190] sm:$0xff]
    %v1717 = vld [vmem:[#allocation10 + $0x198] sm:$0xff]
    %v1718 = vld [vmem:[#allocation10 + $0x1a0] sm:$0xff]
    %v1719 = vld [vmem:[#allocation10 + $0x1a8] sm:$0xff]
    %v1720 = vld [vmem:[#allocation10 + $0x1b0] sm:$0xff]
    %v1721 = vld [vmem:[#allocation10 + $0x1b8] sm:$0xff]
    %v1722 = vld [vmem:[#allocation10 + $0x1c0] sm:$0xff]
    %v1723 = vld [vmem:[#allocation10 + $0x1c8] sm:$0xff]
    %v1724 = vld [vmem:[#allocation10 + $0x1d0] sm:$0xff]
    %v1725 = vld [vmem:[#allocation10 + $0x1d8] sm:$0xff]
    %v1726 = vld [vmem:[#allocation10 + $0x1e0] sm:$0xff]
    %v1727 = vld [vmem:[#allocation10 + $0x1e8] sm:$0xff]
    %v1728 = vld [vmem:[#allocation10 + $0x1f0] sm:$0xff]
    %v1729 = vld [vmem:[#allocation10 + $0x1f8] sm:$0xff]
    %v1730 = vld [vmem:[#allocation11] sm:$0x1]
    %v1732 = vlaneseq
    %v1733 = vshrl.u32 %v1732, 7
    %v1734 = vsub.s32 0, %v1733
    %v1735 = vrot.slane %v1730, %v1734
    %1737 = vmatprep.subr.mxu0 0.0
    %1738 = vmatpush1.msra.mxu0 %v1681
    %1739 = vmatprep.subr.mxu0 0.0
    %1740 = vmatpush1.msra.mxu0 %v1680
    %1741 = vmatprep.subr.mxu0 0.0
    %1742 = vmatpush1.msra.mxu0 %v1679
    %1743 = vmatprep.subr.mxu0 0.0
    %1744 = vmatpush1.msra.mxu0 %v1678
    %1745 = vmatprep.subr.mxu0 0.0
    %1746 = vmatpush1.msra.mxu0 %v1677
    %1747 = vmatprep.subr.mxu0 0.0
    %1748 = vmatpush1.msra.mxu0 %v1676
    %1749 = vmatprep.subr.mxu0 0.0
    %1750 = vmatpush1.msra.mxu0 %v1675
    %1751 = vmatprep.subr.mxu0 0.0
    %1752 = vmatpush1.msra.mxu0 %v1674
    %1753 = vmatprep.subr.mxu0 0.0
    %1754 = vmatpush1.msra.mxu0 %v1673
    %1755 = vmatprep.subr.mxu0 0.0
    %1756 = vmatpush1.msra.mxu0 %v1672
    %1757 = vmatprep.subr.mxu0 0.0
    %1758 = vmatpush1.msra.mxu0 %v1671
    %1759 = vmatprep.subr.mxu0 0.0
    %1760 = vmatpush1.msra.mxu0 %v1670
    %1761 = vmatprep.subr.mxu0 0.0
    %1762 = vmatpush1.msra.mxu0 %v1669
    %1763 = vmatprep.subr.mxu0 0.0
    %1764 = vmatpush1.msra.mxu0 %v1668
    %1765 = vmatprep.subr.mxu0 0.0
    %1766 = vmatpush1.msra.mxu0 %v1667
    %1767 = vmatprep.subr.mxu0 0.0
    %1768 = vmatpush1.msra.mxu0 %v1666
    %1769 = vmatprep.subr.mxu0 0.0
    %1770 = vmatpush2.msra.mxu0 %v1697
    %1771 = vmatprep.subr.mxu0 0.0
    %1772 = vmatpush2.msra.mxu0 %v1696
    %1773 = vmatprep.subr.mxu0 0.0
    %1774 = vmatpush2.msra.mxu0 %v1695
    %1775 = vmatprep.subr.mxu0 0.0
    %1776 = vmatpush2.msra.mxu0 %v1694
    %1777 = vmatprep.subr.mxu0 0.0
    %1778 = vmatpush2.msra.mxu0 %v1693
    %1779 = vmatprep.subr.mxu0 0.0
    %1780 = vmatpush2.msra.mxu0 %v1692
    %1781 = vmatprep.subr.mxu0 0.0
    %1782 = vmatpush2.msra.mxu0 %v1691
    %1783 = vmatprep.subr.mxu0 0.0
    %1784 = vmatpush2.msra.mxu0 %v1690
    %1785 = vmatprep.subr.mxu0 0.0
    %1786 = vmatpush2.msra.mxu0 %v1689
    %1787 = vmatprep.subr.mxu0 0.0
    %1788 = vmatpush2.msra.mxu0 %v1688
    %1789 = vmatprep.subr.mxu0 0.0
    %1790 = vmatpush2.msra.mxu0 %v1687
    %1791 = vmatprep.subr.mxu0 0.0
    %1792 = vmatpush2.msra.mxu0 %v1686
    %1793 = vmatprep.subr.mxu0 0.0
    %1794 = vmatpush2.msra.mxu0 %v1685
    %1795 = vmatprep.subr.mxu0 0.0
    %1796 = vmatpush2.msra.mxu0 %v1684
    %1797 = vmatprep.subr.mxu0 0.0
    %1798 = vmatpush2.msra.mxu0 %v1683
    %1799 = vmatprep.subr.mxu0 0.0
    %1800 = vmatpush2.msra.mxu0 %v1682
    %1801 = vmatprep.mubr.f32.mxu0 %v1663
    %1802 = vmatmul.mubr.f32.gmra.mxu0 %v1662
    %v1803 = vpop.f32.mrf.mxu0
    %v1804 = vadd.f32 %v1735, %v1803
    %v1805 = vpop.f32.mrf.mxu0
    %1806 = vdwg.mxu0
    %1807 = vmatprep.subr.mxu0 0.0
    %1808 = vmatpush1.msra.mxu0 %v1713
    %1809 = vmatprep.subr.mxu0 0.0
    %1810 = vmatpush1.msra.mxu0 %v1712
    %1811 = vmatprep.subr.mxu0 0.0
    %1812 = vmatpush1.msra.mxu0 %v1711
    %1813 = vmatprep.subr.mxu0 0.0
    %1814 = vmatpush1.msra.mxu0 %v1710
    %1815 = vmatprep.subr.mxu0 0.0
    %1816 = vmatpush1.msra.mxu0 %v1709
    %1817 = vmatprep.subr.mxu0 0.0
    %1818 = vmatpush1.msra.mxu0 %v1708
    %1819 = vmatprep.subr.mxu0 0.0
    %1820 = vmatpush1.msra.mxu0 %v1707
    %1821 = vmatprep.subr.mxu0 0.0
    %1822 = vmatpush1.msra.mxu0 %v1706
    %1823 = vmatprep.subr.mxu0 0.0
    %1824 = vmatpush1.msra.mxu0 %v1705
    %1825 = vmatprep.subr.mxu0 0.0
    %1826 = vmatpush1.msra.mxu0 %v1704
    %1827 = vmatprep.subr.mxu0 0.0
    %1828 = vmatpush1.msra.mxu0 %v1703
    %1829 = vmatprep.subr.mxu0 0.0
    %1830 = vmatpush1.msra.mxu0 %v1702
    %1831 = vmatprep.subr.mxu0 0.0
    %1832 = vmatpush1.msra.mxu0 %v1701
    %1833 = vmatprep.subr.mxu0 0.0
    %1834 = vmatpush1.msra.mxu0 %v1700
    %1835 = vmatprep.subr.mxu0 0.0
    %1836 = vmatpush1.msra.mxu0 %v1699
    %1837 = vmatprep.subr.mxu0 0.0
    %1838 = vmatpush1.msra.mxu0 %v1698
    %1839 = vmatprep.subr.mxu0 0.0
    %1840 = vmatpush2.msra.mxu0 %v1729
    %1841 = vmatprep.subr.mxu0 0.0
    %1842 = vmatpush2.msra.mxu0 %v1728
    %1843 = vmatprep.subr.mxu0 0.0
    %1844 = vmatpush2.msra.mxu0 %v1727
    %1845 = vmatprep.subr.mxu0 0.0
    %1846 = vmatpush2.msra.mxu0 %v1726
    %1847 = vmatprep.subr.mxu0 0.0
    %1848 = vmatpush2.msra.mxu0 %v1725
    %1849 = vmatprep.subr.mxu0 0.0
    %1850 = vmatpush2.msra.mxu0 %v1724
    %1851 = vmatprep.subr.mxu0 0.0
    %1852 = vmatpush2.msra.mxu0 %v1723
    %1853 = vmatprep.subr.mxu0 0.0
    %1854 = vmatpush2.msra.mxu0 %v1722
    %1855 = vmatprep.subr.mxu0 0.0
    %1856 = vmatpush2.msra.mxu0 %v1721
    %1857 = vmatprep.subr.mxu0 0.0
    %1858 = vmatpush2.msra.mxu0 %v1720
    %1859 = vmatprep.subr.mxu0 0.0
    %1860 = vmatpush2.msra.mxu0 %v1719
    %1861 = vmatprep.subr.mxu0 0.0
    %1862 = vmatpush2.msra.mxu0 %v1718
    %1863 = vmatprep.subr.mxu0 0.0
    %1864 = vmatpush2.msra.mxu0 %v1717
    %1865 = vmatprep.subr.mxu0 0.0
    %1866 = vmatpush2.msra.mxu0 %v1716
    %1867 = vmatprep.subr.mxu0 0.0
    %1868 = vmatpush2.msra.mxu0 %v1715
    %1869 = vmatprep.subr.mxu0 0.0
    %1870 = vmatpush2.msra.mxu0 %v1714
    %1871 = vmatprep.mubr.f32.mxu0 %v1665
    %1872 = vmatmul.mubr.f32.gmra.mxu0 %v1664
    %v1873 = vpop.f32.mrf.mxu0
    %v1874 = vadd.f32 %v1804, %v1873
    %v1875 = vpop.f32.mrf.mxu0
    %1876 = vdwg.mxu0
    %1877 = vst [vmem:[#allocation13] sm:$0xff] %v1874
    // Predicated region
    $region54: #{nn_forward.1} parent=1 // pred_check
      _
    $region55: #{nn_forward.1} parent=1 // pred_check_branch
      %1879 = sbr.rel (0) target = $region57
    $region56: #{nn_forward.1} parent=1 // pred_region
      %s1881 = ssub.s32 128, 128
      %1882 = vsyncadd [#allocation4], %s1881
      %s1884 = sshll.u32 [#allocation13], 4
      %s1885 = int_to_ptr.vmem [resolvable:$true] %s1884
      %1887 = dma.vmem_to_hbm [thread:$0]  %s1885, 128, %s7, [#allocation4]
    $region57: #{nn_forward.1} parent=1 // pred_fallthru
      _
    // Predicated region
    $region58: #{nn_forward.1} parent=1 // pred_check
      _
    $region59: #{nn_forward.1} parent=1 // pred_check_branch
      %1889 = sbr.rel (0) target = $region61
    $region60: #{nn_forward.1} parent=1 // pred_region
      %1890 = dma.done [#allocation4], 128
    $region61: #{nn_forward.1} parent=1 // pred_fallthru
      _
    %1891 = vsyncpa [#allocation3], 1
    %1892 = vsyncpa [#allocation6], 1
    %1893 = vsyncpa [#allocation9], 1
    %1894 = vsyncpa [#allocation12], 1
    %1895 = vsyncpa [#allocation4], 1

</llo_original>
